<compile_context>
chip_gen: v7x
topology: tpu7x:2x2x1
jax: 0.10.0
libtpu: 0.0.40
codegen_flags: <defaults>
</compile_context>

<pallas_src>
import functools

import jax
import jax.numpy as jnp
from jax.experimental import pallas as pl
from jax.experimental.pallas import tpu as pltpu


# ------------------------------------------------------------------ chip-aware dtypes
def _gate_dtype_for_device():
    """bf16 elementwise/EUP gate math only where the VPU/EUP have a bf16 datapath."""
    try:
        kind = jax.devices()[0].device_kind.lower()
    except Exception:
        return jnp.float32
    if "v6" in kind or "v7" in kind or "7x" in kind:
        return jnp.bfloat16      # v6e / v7x: native bf16 VPU + EUP
    return jnp.float32           # v5e and older: bf16 elementwise would add cast work


# ----------------------------------------------------------------------------- kernel
def _lstm_kernel(x_ref, consts_ref, w_ref, out_ref, *,
                 hidden_dim, seq_length, output_dim, gate_dtype):
    H, O = hidden_dim, output_dim

    # ---------------- unpack coalesced parameter slabs (all off the serial chain) ----
    consts = consts_ref[...]                  # (3, 4H) f32
    wx = consts[0:1, :]                       # (1, 4H) input weights (g-block x2 folded)
    b = consts[1:2, :]                        # (1, 4H) folded bias bx + bh (g-block x2)
    bp = consts[2:3, :O]                      # (1, O)  projection bias

    w = w_ref[...]                            # (2H, 4H) bf16, packed once host-side
    wh_bf = w[:H, :]                          # (H, 4H)  recurrent weights (MXU operand)
    wp_bf = w[H:, :O]                         # (H, O)   projection weights (MXU operand)
    # TODO(synk): per review, hold wh_bf in the MXU weight registers across the serial
    # steps via pltpu.matmul_push_rhs / matmul_acc_lhs / matmul_pop — only after a bundle
    # dump confirms Mosaic actually re-pushes the RHS each unrolled step.

    # ---------------- hoisted input projection for ALL timesteps (h-independent) -----
    x_sb = x_ref[...]                                    # (S, B)
    xz_all = x_sb[:, :, None] * wx + b                   # (S, B, 4H) f32

    def gate_update(z, c_prev, first):
        # One full-width (B, 4H) sigmoid covers all four gates; tanh(x) = 2*sigmoid(2x)-1
        # with the 2x pre-scale folded into the packed g-block weights/bias, so only the
        # g slice needs a post-affine (immediates, no constant-vector inputs).
        gates = jax.nn.sigmoid(z.astype(gate_dtype))     # (B, 4H)
        g = gates[:, 0:H] * 2.0 - 1.0
        i = gates[:, H:2 * H]
        f = gates[:, 2 * H:3 * H]
        o = gates[:, 3 * H:4 * H]
        # TODO(synk): if a bundle dump shows vrot/vsel lane realignment for these 32-lane
        # slices on the critical chain, re-order the gate packing or use pltpu.roll.
        gi = (g * i).astype(jnp.float32)                 # c accumulator kept in f32
        c_new = gi if first else gi + c_prev * f
        h_new = jnp.tanh(c_new) * o                      # tanh on f32 c; h is f32
        return h_new, c_new

    # ---------------- step 0: h = c = 0 -> recurrent matmul is identically zero ------
    h, c = gate_update(xz_all[0], None, first=True)

    # ---------------- serial recurrence (short static trip-count -> Python unroll) ---
    for t in range(1, seq_length):
        z = xz_all[t] + jnp.dot(h.astype(jnp.bfloat16), wh_bf,
                                preferred_element_type=jnp.float32)    # (B, 4H)
        h, c = gate_update(z, c, first=False)

    # Final projection: bf16 operands (h already round-trips bf16 every step), one store.
    out_ref[...] = (jnp.dot(h.astype(jnp.bfloat16), wp_bf,
                            preferred_element_type=jnp.float32) + bp)


def lstm_forward(x, params, *, hidden_dim, seq_length, output_dim):
    """x: (batch, seq) float32. Returns (batch, output_dim) float32."""
    B = x.shape[0]
    # Fail loudly on shapes the kernel's layout assumptions do not cover.
    assert 4 * hidden_dim == 128, "kernel assumes 4*hidden_dim == 128 (one lane group)"
    assert B % 8 == 0, "batch must be a multiple of 8 (sublane tile)"
    assert x.shape[1] == seq_length
    assert 0 < output_dim <= 4 * hidden_dim

    kernel = functools.partial(_lstm_kernel, hidden_dim=hidden_dim,
                               seq_length=seq_length, output_dim=output_dim,
                               gate_dtype=_gate_dtype_for_device())
    vmem = pl.BlockSpec(memory_space=pltpu.MemorySpace.VMEM)
    # Layout plumbing only: (S, B) so each hoisted per-step slab is lane-dense (B, 4H).
    x_sb = x.T
    # Gridless single call: footprint << 1 MiB, whole-array VMEM residency is right on
    # v5e/v6e/v7x.  At large batch / many sequences, add a "parallel" batch grid axis
    # (engages v7x's second TensorCore) and size tiles against 64 MiB VMEM on v7x.
    return pl.pallas_call(
        kernel,
        out_shape=jax.ShapeDtypeStruct((B, output_dim), jnp.float32),
        in_specs=[vmem, vmem, vmem],
        out_specs=vmem,
    )(x_sb, params["consts"], params["weights"])


# --------------------------------------------------------------------- parameter init
def init_params(key, input_dim, hidden_dim, output_dim):
    """Deterministic nn.Linear-style init: U(-1/sqrt(fan_in), 1/sqrt(fan_in))."""
    def linear(k, fan_in, fan_out):
        kw, kb = jax.random.split(k)
        bound = 1.0 / jnp.sqrt(fan_in)
        w = jax.random.uniform(kw, (fan_out, fan_in), jnp.float32, -bound, bound)
        b = jax.random.uniform(kb, (fan_out,), jnp.float32, -bound, bound)
        return w, b

    keys = jax.random.split(key, 9)
    gx = linear(keys[0], input_dim, hidden_dim)
    gh = linear(keys[1], hidden_dim, hidden_dim)
    ix = linear(keys[2], input_dim, hidden_dim)
    ih = linear(keys[3], hidden_dim, hidden_dim)
    fx = linear(keys[4], input_dim, hidden_dim)
    fh = linear(keys[5], hidden_dim, hidden_dim)
    ox = linear(keys[6], input_dim, hidden_dim)
    oh = linear(keys[7], hidden_dim, hidden_dim)
    ph = linear(keys[8], hidden_dim, output_dim)

    raw = dict(gx=gx, gh=gh, ix=ix, ih=ih, fx=fx, fh=fh, ox=ox, oh=oh, ph=ph)

    H = hidden_dim
    # Gate order [g | i | f | o]; weights transposed to (in, out); bx + bh folded.
    wx_all = jnp.concatenate([gx[0].T, ix[0].T, fx[0].T, ox[0].T], axis=1)   # (1, 4H)
    wh_all = jnp.concatenate([gh[0].T, ih[0].T, fh[0].T, oh[0].T], axis=1)   # (H, 4H)
    b_all = jnp.concatenate([gx[1] + gh[1], ix[1] + ih[1],
                             fx[1] + fh[1], ox[1] + oh[1]])[None, :]         # (1, 4H)

    # tanh-via-sigmoid: pre-scale the g-block by 2 (folded here, free in-kernel).
    scale = jnp.concatenate([jnp.full((H,), 2.0, jnp.float32),
                             jnp.ones((3 * H,), jnp.float32)])[None, :]      # (1, 4H)

    # Coalesced f32 constants: row0 = wx*scale, row1 = (bx+bh)*scale, row2 = bp (padded).
    bp_pad = jnp.zeros((1, 4 * H), jnp.float32).at[:, :output_dim].set(ph[1][None, :])
    consts = jnp.concatenate([wx_all * scale, b_all * scale, bp_pad], axis=0)  # (3, 4H)

    # Coalesced bf16 MXU weights: rows [0:H] = wh*scale, rows [H:2H] = wp (zero-padded).
    wp_pad = jnp.zeros((H, 4 * H), jnp.float32).at[:, :output_dim].set(ph[0].T)
    weights = jnp.concatenate([wh_all * scale, wp_pad], axis=0).astype(jnp.bfloat16)

    packed = dict(consts=consts, weights=weights)
    return raw, packed


# ------------------------------------------------------------------ pure-JAX reference
def lstm_reference(x, raw, *, batch_size, hidden_dim, seq_length):
    """Direct transcription of the PyTorch forward (bg/bi/bf/bo/bp are zeros)."""
    assert batch_size == hidden_dim, "PyTorch broadcast requires batch == hidden"
    xv = x.reshape(batch_size, -1, 1)
    h = jnp.zeros((hidden_dim, hidden_dim), jnp.float32)
    c = jnp.zeros((hidden_dim, hidden_dim), jnp.float32)

    def lin(p, v):
        w, b = p
        return v @ w.T + b

    for t in range(seq_length):
        xt = xv[:, t]
        g = jnp.tanh(lin(raw["gx"], xt) + lin(raw["gh"], h))
        i = jax.nn.sigmoid(lin(raw["ix"], xt) + lin(raw["ih"], h))
        f = jax.nn.sigmoid(lin(raw["fx"], xt) + lin(raw["fh"], h))
        o = jax.nn.sigmoid(lin(raw["ox"], xt) + lin(raw["oh"], h))
        c = g * i + c * f
        h = jnp.tanh(c) * o
    return lin(raw["ph"], h)


# -------------------------------------------------------------------------------- main
if __name__ == "__main__":
    seq_length = 8
    input_dim = 1
    hidden_dim = 32          # 4H == 128 -> one lane group for the fused gate pass
    output_dim = 16
    batch_size = 32          # must equal hidden_dim (reference broadcast quirk; see NOTE)

    key = jax.random.PRNGKey(0)
    k_param, k_x = jax.random.split(key)
    raw, packed = init_params(k_param, input_dim, hidden_dim, output_dim)

    x = jax.random.normal(k_x, (batch_size, seq_length), jnp.float32)

    out = lstm_forward(x, packed, hidden_dim=hidden_dim,
                       seq_length=seq_length, output_dim=output_dim)
    out = jax.block_until_ready(out)

    ref = lstm_reference(x, raw, batch_size=batch_size,
                         hidden_dim=hidden_dim, seq_length=seq_length)
    assert out.shape == (batch_size, output_dim)

    # bf16 MXU operands -> 5e-2 tolerance (as before).  On v6e/v7x the gate elementwise
    # math also runs in bf16 (per review), so the budget is loosened a bit further there.
    tol = 5e-2 if _gate_dtype_for_device() is jnp.float32 else 1e-1
    assert jnp.allclose(out, ref, atol=tol, rtol=tol), "mismatch vs reference"

    print("KERNEL_OK")
</pallas_src>

<mosaic_0001>
module attributes {stable_mosaic.version = 11 : i64} {
  func.func @_lstm_kernel(%arg0: memref<8x32xf32, #tpu.memory_space<vmem>>, %arg1: memref<3x128xf32, #tpu.memory_space<vmem>>, %arg2: memref<64x128xbf16, #tpu.memory_space<vmem>>, %arg3: memref<32x16xf32, #tpu.memory_space<vmem>>) attributes {dimension_semantics = [], scalar_prefetch = 0 : i64, scratch_operands = 0 : i64, tpu.core_type = #tpu.core_type<tc>} {
    %c0 = arith.constant 0 : index
    %c0_0 = arith.constant 0 : index
    %0 = vector.load %arg1[%c0, %c0_0] : memref<3x128xf32, #tpu.memory_space<vmem>>, vector<3x128xf32>
    %1 = vector.extract_strided_slice %0 {offsets = [0, 0], sizes = [1, 128], strides = [1, 1]} : vector<3x128xf32> to vector<1x128xf32>
    %2 = vector.extract_strided_slice %0 {offsets = [1, 0], sizes = [1, 128], strides = [1, 1]} : vector<3x128xf32> to vector<1x128xf32>
    %3 = vector.extract_strided_slice %0 {offsets = [2, 0], sizes = [1, 16], strides = [1, 1]} : vector<3x128xf32> to vector<1x16xf32>
    %c0_1 = arith.constant 0 : index
    %c0_2 = arith.constant 0 : index
    %4 = vector.load %arg2[%c0_1, %c0_2] : memref<64x128xbf16, #tpu.memory_space<vmem>>, vector<64x128xbf16>
    %5 = vector.extract_strided_slice %4 {offsets = [0, 0], sizes = [32, 128], strides = [1, 1]} : vector<64x128xbf16> to vector<32x128xbf16>
    %6 = vector.extract_strided_slice %4 {offsets = [32, 0], sizes = [32, 16], strides = [1, 1]} : vector<64x128xbf16> to vector<32x16xbf16>
    %c0_3 = arith.constant 0 : index
    %c0_4 = arith.constant 0 : index
    %7 = vector.load %arg0[%c0_3, %c0_4] : memref<8x32xf32, #tpu.memory_space<vmem>>, vector<8x32xf32>
    %8 = vector.shape_cast %7 : vector<8x32xf32> to vector<8x32x1xf32>
    %9 = vector.shape_cast %1 : vector<1x128xf32> to vector<1x1x128xf32>
    %10 = vector.broadcast %8 : vector<8x32x1xf32> to vector<8x32x128xf32>
    %11 = vector.broadcast %9 : vector<1x1x128xf32> to vector<8x32x128xf32>
    %12 = arith.mulf %10, %11 : vector<8x32x128xf32>
    %13 = vector.shape_cast %2 : vector<1x128xf32> to vector<1x1x128xf32>
    %14 = vector.broadcast %13 : vector<1x1x128xf32> to vector<8x32x128xf32>
    %15 = arith.addf %12, %14 : vector<8x32x128xf32>
    %16 = vector.extract_strided_slice %15 {offsets = [0, 0, 0], sizes = [1, 32, 128], strides = [1, 1, 1]} : vector<8x32x128xf32> to vector<1x32x128xf32>
    %17 = vector.shape_cast %16 : vector<1x32x128xf32> to vector<32x128xf32>
    %18 = arith.negf %17 : vector<32x128xf32>
    %19 = math.exp %18 : vector<32x128xf32>
    %cst = arith.constant 1.000000e+00 : f32
    %20 = vector.broadcast %cst : f32 to vector<32x128xf32>
    %21 = arith.addf %20, %19 : vector<32x128xf32>
    %22 = arith.divf %20, %21 : vector<32x128xf32>
    %23 = vector.extract_strided_slice %22 {offsets = [0, 0], sizes = [32, 32], strides = [1, 1]} : vector<32x128xf32> to vector<32x32xf32>
    %cst_5 = arith.constant 2.000000e+00 : f32
    %24 = vector.broadcast %cst_5 : f32 to vector<32x32xf32>
    %25 = arith.mulf %23, %24 : vector<32x32xf32>
    %cst_6 = arith.constant 1.000000e+00 : f32
    %26 = vector.broadcast %cst_6 : f32 to vector<32x32xf32>
    %27 = arith.subf %25, %26 : vector<32x32xf32>
    %28 = vector.extract_strided_slice %22 {offsets = [0, 32], sizes = [32, 32], strides = [1, 1]} : vector<32x128xf32> to vector<32x32xf32>
    %29 = vector.extract_strided_slice %22 {offsets = [0, 96], sizes = [32, 32], strides = [1, 1]} : vector<32x128xf32> to vector<32x32xf32>
    %30 = arith.mulf %27, %28 : vector<32x32xf32>
    %31 = math.tanh %30 : vector<32x32xf32>
    %32 = arith.mulf %31, %29 : vector<32x32xf32>
    %33 = vector.extract_strided_slice %15 {offsets = [1, 0, 0], sizes = [1, 32, 128], strides = [1, 1, 1]} : vector<8x32x128xf32> to vector<1x32x128xf32>
    %34 = vector.shape_cast %33 : vector<1x32x128xf32> to vector<32x128xf32>
    %35 = arith.truncf %32 : vector<32x32xf32> to vector<32x32xbf16>
    %cst_7 = arith.constant dense<0.000000e+00> : vector<32x128xf32>
    %36 = tpu.matmul %35, %5, %cst_7 {dimension_numbers = #tpu.dot_dimension_numbers<[1], [0], [0], [1], [0, 0, 1, 1], [], []>} : vector<32x32xbf16>, vector<32x128xbf16>, vector<32x128xf32> -> vector<32x128xf32>
    %37 = arith.addf %34, %36 : vector<32x128xf32>
    %38 = arith.negf %37 : vector<32x128xf32>
    %39 = math.exp %38 : vector<32x128xf32>
    %cst_8 = arith.constant 1.000000e+00 : f32
    %40 = vector.broadcast %cst_8 : f32 to vector<32x128xf32>
    %41 = arith.addf %40, %39 : vector<32x128xf32>
    %42 = arith.divf %40, %41 : vector<32x128xf32>
    %43 = vector.extract_strided_slice %42 {offsets = [0, 0], sizes = [32, 32], strides = [1, 1]} : vector<32x128xf32> to vector<32x32xf32>
    %cst_9 = arith.constant 2.000000e+00 : f32
    %44 = vector.broadcast %cst_9 : f32 to vector<32x32xf32>
    %45 = arith.mulf %43, %44 : vector<32x32xf32>
    %cst_10 = arith.constant 1.000000e+00 : f32
    %46 = vector.broadcast %cst_10 : f32 to vector<32x32xf32>
    %47 = arith.subf %45, %46 : vector<32x32xf32>
    %48 = vector.extract_strided_slice %42 {offsets = [0, 32], sizes = [32, 32], strides = [1, 1]} : vector<32x128xf32> to vector<32x32xf32>
    %49 = vector.extract_strided_slice %42 {offsets = [0, 64], sizes = [32, 32], strides = [1, 1]} : vector<32x128xf32> to vector<32x32xf32>
    %50 = vector.extract_strided_slice %42 {offsets = [0, 96], sizes = [32, 32], strides = [1, 1]} : vector<32x128xf32> to vector<32x32xf32>
    %51 = arith.mulf %47, %48 : vector<32x32xf32>
    %52 = arith.mulf %30, %49 : vector<32x32xf32>
    %53 = arith.addf %51, %52 : vector<32x32xf32>
    %54 = math.tanh %53 : vector<32x32xf32>
    %55 = arith.mulf %54, %50 : vector<32x32xf32>
    %56 = vector.extract_strided_slice %15 {offsets = [2, 0, 0], sizes = [1, 32, 128], strides = [1, 1, 1]} : vector<8x32x128xf32> to vector<1x32x128xf32>
    %57 = vector.shape_cast %56 : vector<1x32x128xf32> to vector<32x128xf32>
    %58 = arith.truncf %55 : vector<32x32xf32> to vector<32x32xbf16>
    %cst_11 = arith.constant dense<0.000000e+00> : vector<32x128xf32>
    %59 = tpu.matmul %58, %5, %cst_11 {dimension_numbers = #tpu.dot_dimension_numbers<[1], [0], [0], [1], [0, 0, 1, 1], [], []>} : vector<32x32xbf16>, vector<32x128xbf16>, vector<32x128xf32> -> vector<32x128xf32>
    %60 = arith.addf %57, %59 : vector<32x128xf32>
    %61 = arith.negf %60 : vector<32x128xf32>
    %62 = math.exp %61 : vector<32x128xf32>
    %cst_12 = arith.constant 1.000000e+00 : f32
    %63 = vector.broadcast %cst_12 : f32 to vector<32x128xf32>
    %64 = arith.addf %63, %62 : vector<32x128xf32>
    %65 = arith.divf %63, %64 : vector<32x128xf32>
    %66 = vector.extract_strided_slice %65 {offsets = [0, 0], sizes = [32, 32], strides = [1, 1]} : vector<32x128xf32> to vector<32x32xf32>
    %cst_13 = arith.constant 2.000000e+00 : f32
    %67 = vector.broadcast %cst_13 : f32 to vector<32x32xf32>
    %68 = arith.mulf %66, %67 : vector<32x32xf32>
    %cst_14 = arith.constant 1.000000e+00 : f32
    %69 = vector.broadcast %cst_14 : f32 to vector<32x32xf32>
    %70 = arith.subf %68, %69 : vector<32x32xf32>
    %71 = vector.extract_strided_slice %65 {offsets = [0, 32], sizes = [32, 32], strides = [1, 1]} : vector<32x128xf32> to vector<32x32xf32>
    %72 = vector.extract_strided_slice %65 {offsets = [0, 64], sizes = [32, 32], strides = [1, 1]} : vector<32x128xf32> to vector<32x32xf32>
    %73 = vector.extract_strided_slice %65 {offsets = [0, 96], sizes = [32, 32], strides = [1, 1]} : vector<32x128xf32> to vector<32x32xf32>
    %74 = arith.mulf %70, %71 : vector<32x32xf32>
    %75 = arith.mulf %53, %72 : vector<32x32xf32>
    %76 = arith.addf %74, %75 : vector<32x32xf32>
    %77 = math.tanh %76 : vector<32x32xf32>
    %78 = arith.mulf %77, %73 : vector<32x32xf32>
    %79 = vector.extract_strided_slice %15 {offsets = [3, 0, 0], sizes = [1, 32, 128], strides = [1, 1, 1]} : vector<8x32x128xf32> to vector<1x32x128xf32>
    %80 = vector.shape_cast %79 : vector<1x32x128xf32> to vector<32x128xf32>
    %81 = arith.truncf %78 : vector<32x32xf32> to vector<32x32xbf16>
    %cst_15 = arith.constant dense<0.000000e+00> : vector<32x128xf32>
    %82 = tpu.matmul %81, %5, %cst_15 {dimension_numbers = #tpu.dot_dimension_numbers<[1], [0], [0], [1], [0, 0, 1, 1], [], []>} : vector<32x32xbf16>, vector<32x128xbf16>, vector<32x128xf32> -> vector<32x128xf32>
    %83 = arith.addf %80, %82 : vector<32x128xf32>
    %84 = arith.negf %83 : vector<32x128xf32>
    %85 = math.exp %84 : vector<32x128xf32>
    %cst_16 = arith.constant 1.000000e+00 : f32
    %86 = vector.broadcast %cst_16 : f32 to vector<32x128xf32>
    %87 = arith.addf %86, %85 : vector<32x128xf32>
    %88 = arith.divf %86, %87 : vector<32x128xf32>
    %89 = vector.extract_strided_slice %88 {offsets = [0, 0], sizes = [32, 32], strides = [1, 1]} : vector<32x128xf32> to vector<32x32xf32>
    %cst_17 = arith.constant 2.000000e+00 : f32
    %90 = vector.broadcast %cst_17 : f32 to vector<32x32xf32>
    %91 = arith.mulf %89, %90 : vector<32x32xf32>
    %cst_18 = arith.constant 1.000000e+00 : f32
    %92 = vector.broadcast %cst_18 : f32 to vector<32x32xf32>
    %93 = arith.subf %91, %92 : vector<32x32xf32>
    %94 = vector.extract_strided_slice %88 {offsets = [0, 32], sizes = [32, 32], strides = [1, 1]} : vector<32x128xf32> to vector<32x32xf32>
    %95 = vector.extract_strided_slice %88 {offsets = [0, 64], sizes = [32, 32], strides = [1, 1]} : vector<32x128xf32> to vector<32x32xf32>
    %96 = vector.extract_strided_slice %88 {offsets = [0, 96], sizes = [32, 32], strides = [1, 1]} : vector<32x128xf32> to vector<32x32xf32>
    %97 = arith.mulf %93, %94 : vector<32x32xf32>
    %98 = arith.mulf %76, %95 : vector<32x32xf32>
    %99 = arith.addf %97, %98 : vector<32x32xf32>
    %100 = math.tanh %99 : vector<32x32xf32>
    %101 = arith.mulf %100, %96 : vector<32x32xf32>
    %102 = vector.extract_strided_slice %15 {offsets = [4, 0, 0], sizes = [1, 32, 128], strides = [1, 1, 1]} : vector<8x32x128xf32> to vector<1x32x128xf32>
    %103 = vector.shape_cast %102 : vector<1x32x128xf32> to vector<32x128xf32>
    %104 = arith.truncf %101 : vector<32x32xf32> to vector<32x32xbf16>
    %cst_19 = arith.constant dense<0.000000e+00> : vector<32x128xf32>
    %105 = tpu.matmul %104, %5, %cst_19 {dimension_numbers = #tpu.dot_dimension_numbers<[1], [0], [0], [1], [0, 0, 1, 1], [], []>} : vector<32x32xbf16>, vector<32x128xbf16>, vector<32x128xf32> -> vector<32x128xf32>
    %106 = arith.addf %103, %105 : vector<32x128xf32>
    %107 = arith.negf %106 : vector<32x128xf32>
    %108 = math.exp %107 : vector<32x128xf32>
    %cst_20 = arith.constant 1.000000e+00 : f32
    %109 = vector.broadcast %cst_20 : f32 to vector<32x128xf32>
    %110 = arith.addf %109, %108 : vector<32x128xf32>
    %111 = arith.divf %109, %110 : vector<32x128xf32>
    %112 = vector.extract_strided_slice %111 {offsets = [0, 0], sizes = [32, 32], strides = [1, 1]} : vector<32x128xf32> to vector<32x32xf32>
    %cst_21 = arith.constant 2.000000e+00 : f32
    %113 = vector.broadcast %cst_21 : f32 to vector<32x32xf32>
    %114 = arith.mulf %112, %113 : vector<32x32xf32>
    %cst_22 = arith.constant 1.000000e+00 : f32
    %115 = vector.broadcast %cst_22 : f32 to vector<32x32xf32>
    %116 = arith.subf %114, %115 : vector<32x32xf32>
    %117 = vector.extract_strided_slice %111 {offsets = [0, 32], sizes = [32, 32], strides = [1, 1]} : vector<32x128xf32> to vector<32x32xf32>
    %118 = vector.extract_strided_slice %111 {offsets = [0, 64], sizes = [32, 32], strides = [1, 1]} : vector<32x128xf32> to vector<32x32xf32>
    %119 = vector.extract_strided_slice %111 {offsets = [0, 96], sizes = [32, 32], strides = [1, 1]} : vector<32x128xf32> to vector<32x32xf32>
    %120 = arith.mulf %116, %117 : vector<32x32xf32>
    %121 = arith.mulf %99, %118 : vector<32x32xf32>
    %122 = arith.addf %120, %121 : vector<32x32xf32>
    %123 = math.tanh %122 : vector<32x32xf32>
    %124 = arith.mulf %123, %119 : vector<32x32xf32>
    %125 = vector.extract_strided_slice %15 {offsets = [5, 0, 0], sizes = [1, 32, 128], strides = [1, 1, 1]} : vector<8x32x128xf32> to vector<1x32x128xf32>
    %126 = vector.shape_cast %125 : vector<1x32x128xf32> to vector<32x128xf32>
    %127 = arith.truncf %124 : vector<32x32xf32> to vector<32x32xbf16>
    %cst_23 = arith.constant dense<0.000000e+00> : vector<32x128xf32>
    %128 = tpu.matmul %127, %5, %cst_23 {dimension_numbers = #tpu.dot_dimension_numbers<[1], [0], [0], [1], [0, 0, 1, 1], [], []>} : vector<32x32xbf16>, vector<32x128xbf16>, vector<32x128xf32> -> vector<32x128xf32>
    %129 = arith.addf %126, %128 : vector<32x128xf32>
    %130 = arith.negf %129 : vector<32x128xf32>
    %131 = math.exp %130 : vector<32x128xf32>
    %cst_24 = arith.constant 1.000000e+00 : f32
    %132 = vector.broadcast %cst_24 : f32 to vector<32x128xf32>
    %133 = arith.addf %132, %131 : vector<32x128xf32>
    %134 = arith.divf %132, %133 : vector<32x128xf32>
    %135 = vector.extract_strided_slice %134 {offsets = [0, 0], sizes = [32, 32], strides = [1, 1]} : vector<32x128xf32> to vector<32x32xf32>
    %cst_25 = arith.constant 2.000000e+00 : f32
    %136 = vector.broadcast %cst_25 : f32 to vector<32x32xf32>
    %137 = arith.mulf %135, %136 : vector<32x32xf32>
    %cst_26 = arith.constant 1.000000e+00 : f32
    %138 = vector.broadcast %cst_26 : f32 to vector<32x32xf32>
    %139 = arith.subf %137, %138 : vector<32x32xf32>
    %140 = vector.extract_strided_slice %134 {offsets = [0, 32], sizes = [32, 32], strides = [1, 1]} : vector<32x128xf32> to vector<32x32xf32>
    %141 = vector.extract_strided_slice %134 {offsets = [0, 64], sizes = [32, 32], strides = [1, 1]} : vector<32x128xf32> to vector<32x32xf32>
    %142 = vector.extract_strided_slice %134 {offsets = [0, 96], sizes = [32, 32], strides = [1, 1]} : vector<32x128xf32> to vector<32x32xf32>
    %143 = arith.mulf %139, %140 : vector<32x32xf32>
    %144 = arith.mulf %122, %141 : vector<32x32xf32>
    %145 = arith.addf %143, %144 : vector<32x32xf32>
    %146 = math.tanh %145 : vector<32x32xf32>
    %147 = arith.mulf %146, %142 : vector<32x32xf32>
    %148 = vector.extract_strided_slice %15 {offsets = [6, 0, 0], sizes = [1, 32, 128], strides = [1, 1, 1]} : vector<8x32x128xf32> to vector<1x32x128xf32>
    %149 = vector.shape_cast %148 : vector<1x32x128xf32> to vector<32x128xf32>
    %150 = arith.truncf %147 : vector<32x32xf32> to vector<32x32xbf16>
    %cst_27 = arith.constant dense<0.000000e+00> : vector<32x128xf32>
    %151 = tpu.matmul %150, %5, %cst_27 {dimension_numbers = #tpu.dot_dimension_numbers<[1], [0], [0], [1], [0, 0, 1, 1], [], []>} : vector<32x32xbf16>, vector<32x128xbf16>, vector<32x128xf32> -> vector<32x128xf32>
    %152 = arith.addf %149, %151 : vector<32x128xf32>
    %153 = arith.negf %152 : vector<32x128xf32>
    %154 = math.exp %153 : vector<32x128xf32>
    %cst_28 = arith.constant 1.000000e+00 : f32
    %155 = vector.broadcast %cst_28 : f32 to vector<32x128xf32>
    %156 = arith.addf %155, %154 : vector<32x128xf32>
    %157 = arith.divf %155, %156 : vector<32x128xf32>
    %158 = vector.extract_strided_slice %157 {offsets = [0, 0], sizes = [32, 32], strides = [1, 1]} : vector<32x128xf32> to vector<32x32xf32>
    %cst_29 = arith.constant 2.000000e+00 : f32
    %159 = vector.broadcast %cst_29 : f32 to vector<32x32xf32>
    %160 = arith.mulf %158, %159 : vector<32x32xf32>
    %cst_30 = arith.constant 1.000000e+00 : f32
    %161 = vector.broadcast %cst_30 : f32 to vector<32x32xf32>
    %162 = arith.subf %160, %161 : vector<32x32xf32>
    %163 = vector.extract_strided_slice %157 {offsets = [0, 32], sizes = [32, 32], strides = [1, 1]} : vector<32x128xf32> to vector<32x32xf32>
    %164 = vector.extract_strided_slice %157 {offsets = [0, 64], sizes = [32, 32], strides = [1, 1]} : vector<32x128xf32> to vector<32x32xf32>
    %165 = vector.extract_strided_slice %157 {offsets = [0, 96], sizes = [32, 32], strides = [1, 1]} : vector<32x128xf32> to vector<32x32xf32>
    %166 = arith.mulf %162, %163 : vector<32x32xf32>
    %167 = arith.mulf %145, %164 : vector<32x32xf32>
    %168 = arith.addf %166, %167 : vector<32x32xf32>
    %169 = math.tanh %168 : vector<32x32xf32>
    %170 = arith.mulf %169, %165 : vector<32x32xf32>
    %171 = vector.extract_strided_slice %15 {offsets = [7, 0, 0], sizes = [1, 32, 128], strides = [1, 1, 1]} : vector<8x32x128xf32> to vector<1x32x128xf32>
    %172 = vector.shape_cast %171 : vector<1x32x128xf32> to vector<32x128xf32>
    %173 = arith.truncf %170 : vector<32x32xf32> to vector<32x32xbf16>
    %cst_31 = arith.constant dense<0.000000e+00> : vector<32x128xf32>
    %174 = tpu.matmul %173, %5, %cst_31 {dimension_numbers = #tpu.dot_dimension_numbers<[1], [0], [0], [1], [0, 0, 1, 1], [], []>} : vector<32x32xbf16>, vector<32x128xbf16>, vector<32x128xf32> -> vector<32x128xf32>
    %175 = arith.addf %172, %174 : vector<32x128xf32>
    %176 = arith.negf %175 : vector<32x128xf32>
    %177 = math.exp %176 : vector<32x128xf32>
    %cst_32 = arith.constant 1.000000e+00 : f32
    %178 = vector.broadcast %cst_32 : f32 to vector<32x128xf32>
    %179 = arith.addf %178, %177 : vector<32x128xf32>
    %180 = arith.divf %178, %179 : vector<32x128xf32>
    %181 = vector.extract_strided_slice %180 {offsets = [0, 0], sizes = [32, 32], strides = [1, 1]} : vector<32x128xf32> to vector<32x32xf32>
    %cst_33 = arith.constant 2.000000e+00 : f32
    %182 = vector.broadcast %cst_33 : f32 to vector<32x32xf32>
    %183 = arith.mulf %181, %182 : vector<32x32xf32>
    %cst_34 = arith.constant 1.000000e+00 : f32
    %184 = vector.broadcast %cst_34 : f32 to vector<32x32xf32>
    %185 = arith.subf %183, %184 : vector<32x32xf32>
    %186 = vector.extract_strided_slice %180 {offsets = [0, 32], sizes = [32, 32], strides = [1, 1]} : vector<32x128xf32> to vector<32x32xf32>
    %187 = vector.extract_strided_slice %180 {offsets = [0, 64], sizes = [32, 32], strides = [1, 1]} : vector<32x128xf32> to vector<32x32xf32>
    %188 = vector.extract_strided_slice %180 {offsets = [0, 96], sizes = [32, 32], strides = [1, 1]} : vector<32x128xf32> to vector<32x32xf32>
    %189 = arith.mulf %185, %186 : vector<32x32xf32>
    %190 = arith.mulf %168, %187 : vector<32x32xf32>
    %191 = arith.addf %189, %190 : vector<32x32xf32>
    %192 = math.tanh %191 : vector<32x32xf32>
    %193 = arith.mulf %192, %188 : vector<32x32xf32>
    %194 = arith.truncf %193 : vector<32x32xf32> to vector<32x32xbf16>
    %cst_35 = arith.constant dense<0.000000e+00> : vector<32x16xf32>
    %195 = tpu.matmul %194, %6, %cst_35 {dimension_numbers = #tpu.dot_dimension_numbers<[1], [0], [0], [1], [0, 0, 1, 1], [], []>} : vector<32x32xbf16>, vector<32x16xbf16>, vector<32x16xf32> -> vector<32x16xf32>
    %196 = vector.broadcast %3 : vector<1x16xf32> to vector<32x16xf32>
    %197 = arith.addf %195, %196 : vector<32x16xf32>
    %c0_36 = arith.constant 0 : index
    %c0_37 = arith.constant 0 : index
    %198 = vector.load %arg3[%c0_36, %c0_37] : memref<32x16xf32, #tpu.memory_space<vmem>>, vector<32x16xf32>
    tpu.vector_store %arg3[%c0_36, %c0_37], %197 {strides = array<i32>} : memref<32x16xf32, #tpu.memory_space<vmem>>, vector<32x16xf32>,
    return
  }
}

</mosaic_0001>

<llo_original>
// kernel: tpu_custom_call.1
$region0: #{tpu_custom_call.1}
  #allocation0 [shape = 'u32[]', space=smem, size = 0x4, offset = 0x4, fixed_abs, tag = 'smem constant byte address 0x4 - core index']
  #allocation1 [shape = 'u32[144,128]{1,0:T(1,128)}', space=vmem, size = 0x12000, scoped, tag = 'internal scratch']
  %s0 = inlined_call_operand.hbm [shape: f32[8,32], index: 0, kind: input, shape index: {}]
  %s1 = inlined_call_operand.hbm [shape: f32[3,128], index: 1, kind: input, shape index: {}]
  %s2 = inlined_call_operand.hbm [shape: bf16[64,128], index: 2, kind: input, shape index: {}]
  %s3 = inlined_call_operand.vmem [shape: f32[32,16], index: 3, kind: output, shape index: {}]
  %s4 = sld [smem:[#allocation0]]
  $region34: #{tpu_custom_call.1} parent=0
    _
  %s6 = ssub.s32 1, %s4
  %s7 = scalar_select 0, %s6, %s4
  $region1: #{tpu_custom_call.1} parent=0
    #allocation2 [shape = 'u8[4096]{0}', space=vmem, size = 0x1000, scoped, tag = 'input window, operand 0, single buffered']
    #allocation3 [shape = 's32[1]{0}', space=sflag, size = 0x4, scoped, tag = 'scoped memory for tpu_custom_call.1']
    #allocation4 [shape = 'u8[2048]{0}', space=vmem, size = 0x800, scoped, tag = 'input window, operand 1, single buffered']
    #allocation5 [shape = 's32[1]{0}', space=sflag, size = 0x4, scoped, tag = 'scoped memory for tpu_custom_call.1']
    #allocation6 [shape = 'u8[16384]{0}', space=vmem, size = 0x4000, scoped, tag = 'input window, operand 2, single buffered']
    %8 = vsyncpa [#allocation3], 0
    %9 = vsyncpa [#allocation5], 0
    // Predicated region
    $region2: #{tpu_custom_call.1} parent=1 // pred_check
      _
    $region3: #{tpu_custom_call.1} parent=1 // pred_check_branch
      %11 = sbr.rel (0) target = $region5
    $region4: #{tpu_custom_call.1} parent=1 // pred_region
      %s13 = ssub.s32 128, 128
      %14 = vsyncadd [#allocation3], %s13
      %s16 = sshll.u32 [#allocation2], 4
      %s17 = int_to_ptr.vmem [resolvable:$true] %s16
      %19 = dma.hbm_to_vmem [thread:$0]  %s0, 128, %s17, [#allocation3]
    $region5: #{tpu_custom_call.1} parent=1 // pred_fallthru
      _
    // Predicated region
    $region6: #{tpu_custom_call.1} parent=1 // pred_check
      _
    $region7: #{tpu_custom_call.1} parent=1 // pred_check_branch
      %21 = sbr.rel (0) target = $region9
    $region8: #{tpu_custom_call.1} parent=1 // pred_region
      %s23 = ssub.s32 64, 64
      %24 = vsyncadd [#allocation5], %s23
      %s26 = sshll.u32 [#allocation4], 4
      %s27 = int_to_ptr.vmem [resolvable:$true] %s26
      %29 = dma.hbm_to_vmem [thread:$0]  %s1, 64, %s27, [#allocation5]
    $region9: #{tpu_custom_call.1} parent=1 // pred_fallthru
      _
    // Predicated region
    $region10: #{tpu_custom_call.1} parent=1 // pred_check
      _
    $region11: #{tpu_custom_call.1} parent=1 // pred_check_branch
      %31 = sbr.rel (0) target = $region13
    $region12: #{tpu_custom_call.1} parent=1 // pred_region
      %s33 = ssub.s32 512, 512
      %34 = vsyncadd [#allocation5], %s33
      %s35 = sshll.u32 [#allocation6], 4
      %s36 = int_to_ptr.vmem [resolvable:$true] %s35
      %41 = dma.hbm_to_vmem [thread:$0]  %s2, 512, %s36, [#allocation5], 64, 64, 4
    $region13: #{tpu_custom_call.1} parent=1 // pred_fallthru
      _
    // Predicated region
    $region14: #{tpu_custom_call.1} parent=1 // pred_check
      _
    $region15: #{tpu_custom_call.1} parent=1 // pred_check_branch
      %43 = sbr.rel (0) target = $region17
    $region16: #{tpu_custom_call.1} parent=1 // pred_region
      %44 = dma.done [#allocation3], 128
    $region17: #{tpu_custom_call.1} parent=1 // pred_fallthru
      _
    // Predicated region
    $region18: #{tpu_custom_call.1} parent=1 // pred_check
      _
    $region19: #{tpu_custom_call.1} parent=1 // pred_check_branch
      %46 = sbr.rel (0) target = $region21
    $region20: #{tpu_custom_call.1} parent=1 // pred_region
      %47 = dma.done [#allocation5], 64
    $region21: #{tpu_custom_call.1} parent=1 // pred_fallthru
      _
    // Predicated region
    $region22: #{tpu_custom_call.1} parent=1 // pred_check
      _
    $region23: #{tpu_custom_call.1} parent=1 // pred_check_branch
      %49 = sbr.rel (0) target = $region25
    $region24: #{tpu_custom_call.1} parent=1 // pred_region
      %50 = dma.done [#allocation5], 512
    $region25: #{tpu_custom_call.1} parent=1 // pred_fallthru
      _
    %v52 = vld [vmem:[#allocation4] sm:$0x7]
    %v53 = vld [vmem:[#allocation6] sm:$0xf]
    %v54 = vld [vmem:[#allocation6 + $0x4] sm:$0xf]
    %v55 = vld [vmem:[#allocation6 + $0x8] sm:$0xf]
    %v56 = vld [vmem:[#allocation6 + $0xc] sm:$0xf]
    %v57 = vld [vmem:[#allocation6 + $0x10] sm:$0xf]
    %v58 = vld [vmem:[#allocation6 + $0x14] sm:$0xf]
    %v59 = vld [vmem:[#allocation6 + $0x18] sm:$0xf]
    %v60 = vld [vmem:[#allocation6 + $0x1c] sm:$0xf]
    %v61 = vld [vmem:[#allocation2] sm:$0xff]
    %v62 = vlaneseq
    %v63 = vshrl.u32 %v62, 7
    %v64 = vsub.s32 0, %v63
    %v65 = vrot.slane %v61, %v64
    %67 = vbcast.lane.b32.xlu0 %v65, 256
    %v68 = vpop.permute.xlu0 %67
    %s70 = sor.u32 256, 8
    %71 = vbcast.lane.b32.xlu0 %v65, %s70
    %v72 = vpop.permute.xlu0 %71
    %s74 = sor.u32 256, 16
    %75 = vbcast.lane.b32.xlu0 %v65, %s74
    %v76 = vpop.permute.xlu0 %75
    %s78 = sor.u32 256, 24
    %79 = vbcast.lane.b32.xlu0 %v65, %s78
    %v80 = vpop.permute.xlu0 %79
    %v81 = vlaneseq
    %v82 = vshrl.u32 %v81, 7
    %v83 = vsub.s32 1, %v82
    %v84 = vrot.slane %v61, %v83
    %86 = vbcast.lane.b32.xlu0 %v84, 256
    %v87 = vpop.permute.xlu0 %86
    %s89 = sor.u32 256, 8
    %90 = vbcast.lane.b32.xlu0 %v84, %s89
    %v91 = vpop.permute.xlu0 %90
    %s93 = sor.u32 256, 16
    %94 = vbcast.lane.b32.xlu0 %v84, %s93
    %v95 = vpop.permute.xlu0 %94
    %s97 = sor.u32 256, 24
    %98 = vbcast.lane.b32.xlu0 %v84, %s97
    %v99 = vpop.permute.xlu0 %98
    %v100 = vlaneseq
    %v101 = vshrl.u32 %v100, 7
    %v102 = vsub.s32 2, %v101
    %v103 = vrot.slane %v61, %v102
    %105 = vbcast.lane.b32.xlu0 %v103, 256
    %v106 = vpop.permute.xlu0 %105
    %s108 = sor.u32 256, 8
    %109 = vbcast.lane.b32.xlu0 %v103, %s108
    %v110 = vpop.permute.xlu0 %109
    %s112 = sor.u32 256, 16
    %113 = vbcast.lane.b32.xlu0 %v103, %s112
    %v114 = vpop.permute.xlu0 %113
    %s116 = sor.u32 256, 24
    %117 = vbcast.lane.b32.xlu0 %v103, %s116
    %v118 = vpop.permute.xlu0 %117
    %v119 = vlaneseq
    %v120 = vshrl.u32 %v119, 7
    %v121 = vsub.s32 3, %v120
    %v122 = vrot.slane %v61, %v121
    %124 = vbcast.lane.b32.xlu0 %v122, 256
    %v125 = vpop.permute.xlu0 %124
    %s127 = sor.u32 256, 8
    %128 = vbcast.lane.b32.xlu0 %v122, %s127
    %v129 = vpop.permute.xlu0 %128
    %s131 = sor.u32 256, 16
    %132 = vbcast.lane.b32.xlu0 %v122, %s131
    %v133 = vpop.permute.xlu0 %132
    %s135 = sor.u32 256, 24
    %136 = vbcast.lane.b32.xlu0 %v122, %s135
    %v137 = vpop.permute.xlu0 %136
    %v138 = vlaneseq
    %v139 = vshrl.u32 %v138, 7
    %v140 = vsub.s32 4, %v139
    %v141 = vrot.slane %v61, %v140
    %143 = vbcast.lane.b32.xlu0 %v141, 256
    %v144 = vpop.permute.xlu0 %143
    %s146 = sor.u32 256, 8
    %147 = vbcast.lane.b32.xlu0 %v141, %s146
    %v148 = vpop.permute.xlu0 %147
    %s150 = sor.u32 256, 16
    %151 = vbcast.lane.b32.xlu0 %v141, %s150
    %v152 = vpop.permute.xlu0 %151
    %s154 = sor.u32 256, 24
    %155 = vbcast.lane.b32.xlu0 %v141, %s154
    %v156 = vpop.permute.xlu0 %155
    %v157 = vlaneseq
    %v158 = vshrl.u32 %v157, 7
    %v159 = vsub.s32 5, %v158
    %v160 = vrot.slane %v61, %v159
    %162 = vbcast.lane.b32.xlu0 %v160, 256
    %v163 = vpop.permute.xlu0 %162
    %s165 = sor.u32 256, 8
    %166 = vbcast.lane.b32.xlu0 %v160, %s165
    %v167 = vpop.permute.xlu0 %166
    %s169 = sor.u32 256, 16
    %170 = vbcast.lane.b32.xlu0 %v160, %s169
    %v171 = vpop.permute.xlu0 %170
    %s173 = sor.u32 256, 24
    %174 = vbcast.lane.b32.xlu0 %v160, %s173
    %v175 = vpop.permute.xlu0 %174
    %v176 = vlaneseq
    %v177 = vshrl.u32 %v176, 7
    %v178 = vsub.s32 6, %v177
    %v179 = vrot.slane %v61, %v178
    %181 = vbcast.lane.b32.xlu0 %v179, 256
    %v182 = vpop.permute.xlu0 %181
    %s184 = sor.u32 256, 8
    %185 = vbcast.lane.b32.xlu0 %v179, %s184
    %v186 = vpop.permute.xlu0 %185
    %s188 = sor.u32 256, 16
    %189 = vbcast.lane.b32.xlu0 %v179, %s188
    %v190 = vpop.permute.xlu0 %189
    %s192 = sor.u32 256, 24
    %193 = vbcast.lane.b32.xlu0 %v179, %s192
    %v194 = vpop.permute.xlu0 %193
    %v195 = vlaneseq
    %v196 = vshrl.u32 %v195, 7
    %v197 = vsub.s32 7, %v196
    %v198 = vrot.slane %v61, %v197
    %200 = vbcast.lane.b32.xlu0 %v198, 256
    %v201 = vpop.permute.xlu0 %200
    %s203 = sor.u32 256, 8
    %204 = vbcast.lane.b32.xlu0 %v198, %s203
    %v205 = vpop.permute.xlu0 %204
    %s207 = sor.u32 256, 16
    %208 = vbcast.lane.b32.xlu0 %v198, %s207
    %v209 = vpop.permute.xlu0 %208
    %s211 = sor.u32 256, 24
    %212 = vbcast.lane.b32.xlu0 %v198, %s211
    %v213 = vpop.permute.xlu0 %212
    %v214 = vlaneseq
    %v215 = vshrl.u32 %v214, 7
    %v216 = vsub.s32 0, %v215
    %v217 = vrot.slane %v52, %v216
    %v218 = vmul.f32 %v68, %v217
    %v219 = vmul.f32 %v72, %v217
    %v220 = vmul.f32 %v76, %v217
    %v221 = vmul.f32 %v80, %v217
    %v222 = vmul.f32 %v87, %v217
    %v223 = vmul.f32 %v91, %v217
    %v224 = vmul.f32 %v95, %v217
    %v225 = vmul.f32 %v99, %v217
    %v226 = vmul.f32 %v106, %v217
    %v227 = vmul.f32 %v110, %v217
    %v228 = vmul.f32 %v114, %v217
    %v229 = vmul.f32 %v118, %v217
    %v230 = vmul.f32 %v125, %v217
    %v231 = vmul.f32 %v129, %v217
    %v232 = vmul.f32 %v133, %v217
    %v233 = vmul.f32 %v137, %v217
    %v234 = vmul.f32 %v144, %v217
    %v235 = vmul.f32 %v148, %v217
    %v236 = vmul.f32 %v152, %v217
    %v237 = vmul.f32 %v156, %v217
    %v238 = vmul.f32 %v163, %v217
    %v239 = vmul.f32 %v167, %v217
    %v240 = vmul.f32 %v171, %v217
    %v241 = vmul.f32 %v175, %v217
    %v242 = vmul.f32 %v182, %v217
    %v243 = vmul.f32 %v186, %v217
    %v244 = vmul.f32 %v190, %v217
    %v245 = vmul.f32 %v194, %v217
    %v246 = vmul.f32 %v201, %v217
    %v247 = vmul.f32 %v205, %v217
    %v248 = vmul.f32 %v209, %v217
    %v249 = vmul.f32 %v213, %v217
    %v250 = vlaneseq
    %v251 = vshrl.u32 %v250, 7
    %v252 = vsub.s32 1, %v251
    %v253 = vrot.slane %v52, %v252
    %v254 = vadd.f32 %v218, %v253
    %v255 = vadd.f32 %v219, %v253
    %v256 = vadd.f32 %v220, %v253
    %v257 = vadd.f32 %v221, %v253
    %v258 = vadd.f32 %v222, %v253
    %v259 = vadd.f32 %v223, %v253
    %v260 = vadd.f32 %v224, %v253
    %v261 = vadd.f32 %v225, %v253
    %v262 = vadd.f32 %v226, %v253
    %v263 = vadd.f32 %v227, %v253
    %v264 = vadd.f32 %v228, %v253
    %v265 = vadd.f32 %v229, %v253
    %v266 = vadd.f32 %v230, %v253
    %v267 = vadd.f32 %v231, %v253
    %v268 = vadd.f32 %v232, %v253
    %v269 = vadd.f32 %v233, %v253
    %v270 = vadd.f32 %v234, %v253
    %v271 = vadd.f32 %v235, %v253
    %v272 = vadd.f32 %v236, %v253
    %v273 = vadd.f32 %v237, %v253
    %v274 = vadd.f32 %v238, %v253
    %v275 = vadd.f32 %v239, %v253
    %v276 = vadd.f32 %v240, %v253
    %v277 = vadd.f32 %v241, %v253
    %v278 = vadd.f32 %v242, %v253
    %v279 = vadd.f32 %v243, %v253
    %v280 = vadd.f32 %v244, %v253
    %v281 = vadd.f32 %v245, %v253
    %v282 = vadd.f32 %v246, %v253
    %v283 = vadd.f32 %v247, %v253
    %v284 = vadd.f32 %v248, %v253
    %v285 = vadd.f32 %v249, %v253
    %v286 = vxor.u32 %v254, 2147483648
    %v287 = vxor.u32 %v255, 2147483648
    %v288 = vxor.u32 %v256, 2147483648
    %v289 = vxor.u32 %v257, 2147483648
    %v290 = vmul.f32 %v286, 1.442695
    %v291 = vpow.pop %v290
    %v292 = vmul.f32 %v287, 1.442695
    %v293 = vpow.pop %v292
    %v294 = vmul.f32 %v288, 1.442695
    %v295 = vpow.pop %v294
    %v296 = vmul.f32 %v289, 1.442695
    %v297 = vpow.pop %v296
    %v298 = vadd.f32 %v291, 1.0
    %v299 = vadd.f32 %v293, 1.0
    %v300 = vadd.f32 %v295, 1.0
    %v301 = vadd.f32 %v297, 1.0
    %v302 = vrcp.pop %v298
    %v303 = vmul.f32 1.0, %v302
    %v304 = vrcp.pop %v299
    %v305 = vmul.f32 1.0, %v304
    %v306 = vrcp.pop %v300
    %v307 = vmul.f32 1.0, %v306
    %v308 = vrcp.pop %v301
    %v309 = vmul.f32 1.0, %v308
    %v310 = vmul.f32 %v303, 2.0
    %v311 = vmul.f32 %v305, 2.0
    %v312 = vmul.f32 %v307, 2.0
    %v313 = vmul.f32 %v309, 2.0
    %v314 = vsub.f32 %v310, 1.0
    %v315 = vsub.f32 %v311, 1.0
    %v316 = vsub.f32 %v312, 1.0
    %v317 = vsub.f32 %v313, 1.0
    %322 = vrot.lane.b32.xlu0 %v303, 96
    %v323 = vpop.permute.xlu0 %322
    %324 = vrot.lane.b32.xlu0 %v305, 96
    %v325 = vpop.permute.xlu0 %324
    %326 = vrot.lane.b32.xlu0 %v307, 96
    %v327 = vpop.permute.xlu0 %326
    %328 = vrot.lane.b32.xlu0 %v309, 96
    %v329 = vpop.permute.xlu0 %328
    %v334 = vmul.f32 %v314, %v323
    %v335 = vmul.f32 %v315, %v325
    %v336 = vmul.f32 %v316, %v327
    %v337 = vmul.f32 %v317, %v329
    %v338 = vtanh.pop %v334
    %v339 = vtanh.pop %v335
    %v340 = vtanh.pop %v336
    %v341 = vtanh.pop %v337
    %342 = vrot.lane.b32.xlu0 %v303, 32
    %v343 = vpop.permute.xlu0 %342
    %344 = vrot.lane.b32.xlu0 %v305, 32
    %v345 = vpop.permute.xlu0 %344
    %346 = vrot.lane.b32.xlu0 %v307, 32
    %v347 = vpop.permute.xlu0 %346
    %348 = vrot.lane.b32.xlu0 %v309, 32
    %v349 = vpop.permute.xlu0 %348
    %v354 = vmul.f32 %v338, %v343
    %v355 = vmul.f32 %v339, %v345
    %v356 = vmul.f32 %v340, %v347
    %v357 = vmul.f32 %v341, %v349
    %v358 = vpack.c.bf16 %v355, %v354
    %v359 = vpack.c.bf16 %v357, %v356
    %v364 = vunpack.c.l.b16 %v53
    %v365 = vunpack.c.l.b16 %v54
    %v366 = vunpack.c.l.b16 %v55
    %v367 = vunpack.c.l.b16 %v56
    %v368 = vpack.c.b16 %v365, %v364
    %v369 = vpack.c.b16 %v367, %v366
    %vm372 = vcmask 261120
    %v374 = vsel %vm372, %v358, 0
    %v377 = vsel %vm372, %v359, 0
    %379 = vmatprep.subr.bf16.mxu0 0
    %380 = vmatpush1.bf16.msra.mxu0 %v368
    %381 = vmatprep.subr.bf16.mxu0 0
    %382 = vmatpush1.bf16.msra.mxu0 %v369
    %383 = vmatprep.subr.bf16.mxu0 0
    %384 = vmatpush1.bf16.msra.mxu0 0
    %385 = vmatprep.subr.bf16.mxu0 0
    %386 = vmatpush1.bf16.msra.mxu0 0
    %387 = vmatprep.subr.bf16.mxu0 0
    %388 = vmatpush1.bf16.msra.mxu0 0
    %389 = vmatprep.subr.bf16.mxu0 0
    %390 = vmatpush1.bf16.msra.mxu0 0
    %391 = vmatprep.subr.bf16.mxu0 0
    %392 = vmatpush1.bf16.msra.mxu0 0
    %393 = vmatprep.subr.bf16.mxu0 0
    %394 = vmatpush1.bf16.msra.mxu0 0
    %395 = vmatprep.subr.bf16.mxu0 0
    %396 = vmatpush1.bf16.msra.mxu0 0
    %397 = vmatprep.subr.bf16.mxu0 0
    %398 = vmatpush1.bf16.msra.mxu0 0
    %399 = vmatprep.subr.bf16.mxu0 0
    %400 = vmatpush1.bf16.msra.mxu0 0
    %401 = vmatprep.subr.bf16.mxu0 0
    %402 = vmatpush1.bf16.msra.mxu0 0
    %403 = vmatprep.subr.bf16.mxu0 0
    %404 = vmatpush1.bf16.msra.mxu0 0
    %405 = vmatprep.subr.bf16.mxu0 0
    %406 = vmatpush1.bf16.msra.mxu0 0
    %407 = vmatprep.subr.bf16.mxu0 0
    %408 = vmatpush1.bf16.msra.mxu0 0
    %409 = vmatprep.subr.bf16.mxu0 0
    %410 = vmatpush1.bf16.msra.mxu0 0
    %411 = vmatprep.mubr.bf16.mxu0 0
    %412 = vmatmul.mubr.bf16.gmra.mrb[0].mxu0 %v374
    %v413 = vpop.f32.mrb[0].mxu0
    %v414 = vadd.f32 0.0, %v413
    %v415 = vpop.f32.mrb[0].mxu0
    %v416 = vpop.f32.mrb[0].mxu0
    %v417 = vadd.f32 0.0, %v416
    %v418 = vpop.f32.mrb[0].mxu0
    %419 = vmatprep.mubr.bf16.mxu0 0
    %420 = vmatmul.mubr.bf16.gmra.mrb[0].mxu0 %v377
    %v421 = vpop.f32.mrb[0].mxu0
    %v422 = vadd.f32 0.0, %v421
    %v423 = vpop.f32.mrb[0].mxu0
    %v424 = vpop.f32.mrb[0].mxu0
    %v425 = vadd.f32 0.0, %v424
    %v426 = vpop.f32.mrb[0].mxu0
    %427 = vdwg.mxu0
    %v428 = vadd.f32 %v258, %v414
    %v429 = vadd.f32 %v259, %v417
    %v430 = vadd.f32 %v260, %v422
    %v431 = vadd.f32 %v261, %v425
    %v432 = vxor.u32 %v428, 2147483648
    %v433 = vxor.u32 %v429, 2147483648
    %v434 = vxor.u32 %v430, 2147483648
    %v435 = vxor.u32 %v431, 2147483648
    %v436 = vmul.f32 %v432, 1.442695
    %v437 = vpow.pop %v436
    %v438 = vmul.f32 %v433, 1.442695
    %v439 = vpow.pop %v438
    %v440 = vmul.f32 %v434, 1.442695
    %v441 = vpow.pop %v440
    %v442 = vmul.f32 %v435, 1.442695
    %v443 = vpow.pop %v442
    %v444 = vadd.f32 %v437, 1.0
    %v445 = vadd.f32 %v439, 1.0
    %v446 = vadd.f32 %v441, 1.0
    %v447 = vadd.f32 %v443, 1.0
    %v448 = vrcp.pop %v444
    %v449 = vmul.f32 1.0, %v448
    %v450 = vrcp.pop %v445
    %v451 = vmul.f32 1.0, %v450
    %v452 = vrcp.pop %v446
    %v453 = vmul.f32 1.0, %v452
    %v454 = vrcp.pop %v447
    %v455 = vmul.f32 1.0, %v454
    %v456 = vmul.f32 %v449, 2.0
    %v457 = vmul.f32 %v451, 2.0
    %v458 = vmul.f32 %v453, 2.0
    %v459 = vmul.f32 %v455, 2.0
    %v460 = vsub.f32 %v456, 1.0
    %v461 = vsub.f32 %v457, 1.0
    %v462 = vsub.f32 %v458, 1.0
    %v463 = vsub.f32 %v459, 1.0
    %468 = vrot.lane.b32.xlu0 %v449, 96
    %v469 = vpop.permute.xlu0 %468
    %470 = vrot.lane.b32.xlu0 %v451, 96
    %v471 = vpop.permute.xlu0 %470
    %472 = vrot.lane.b32.xlu0 %v453, 96
    %v473 = vpop.permute.xlu0 %472
    %474 = vrot.lane.b32.xlu0 %v455, 96
    %v475 = vpop.permute.xlu0 %474
    %v480 = vmul.f32 %v460, %v469
    %v481 = vmul.f32 %v461, %v471
    %v482 = vmul.f32 %v462, %v473
    %v483 = vmul.f32 %v463, %v475
    %484 = vrot.lane.b32.xlu0 %v449, 64
    %v485 = vpop.permute.xlu0 %484
    %486 = vrot.lane.b32.xlu0 %v451, 64
    %v487 = vpop.permute.xlu0 %486
    %488 = vrot.lane.b32.xlu0 %v453, 64
    %v489 = vpop.permute.xlu0 %488
    %490 = vrot.lane.b32.xlu0 %v455, 64
    %v491 = vpop.permute.xlu0 %490
    %v496 = vmul.f32 %v334, %v485
    %v497 = vmul.f32 %v335, %v487
    %v498 = vmul.f32 %v336, %v489
    %v499 = vmul.f32 %v337, %v491
    %v500 = vadd.f32 %v480, %v496
    %v501 = vadd.f32 %v481, %v497
    %v502 = vadd.f32 %v482, %v498
    %v503 = vadd.f32 %v483, %v499
    %v504 = vtanh.pop %v500
    %v505 = vtanh.pop %v501
    %v506 = vtanh.pop %v502
    %v507 = vtanh.pop %v503
    %508 = vrot.lane.b32.xlu0 %v449, 32
    %v509 = vpop.permute.xlu0 %508
    %510 = vrot.lane.b32.xlu0 %v451, 32
    %v511 = vpop.permute.xlu0 %510
    %512 = vrot.lane.b32.xlu0 %v453, 32
    %v513 = vpop.permute.xlu0 %512
    %514 = vrot.lane.b32.xlu0 %v455, 32
    %v515 = vpop.permute.xlu0 %514
    %v520 = vmul.f32 %v504, %v509
    %v521 = vmul.f32 %v505, %v511
    %v522 = vmul.f32 %v506, %v513
    %v523 = vmul.f32 %v507, %v515
    %v524 = vpack.c.bf16 %v521, %v520
    %v525 = vpack.c.bf16 %v523, %v522
    %v527 = vsel %vm372, %v524, 0
    %v530 = vsel %vm372, %v525, 0
    %532 = vmatprep.subr.bf16.mxu0 0
    %533 = vmatpush1.bf16.msra.mxu0 %v368
    %534 = vmatprep.subr.bf16.mxu0 0
    %535 = vmatpush1.bf16.msra.mxu0 %v369
    %536 = vmatprep.subr.bf16.mxu0 0
    %537 = vmatpush1.bf16.msra.mxu0 0
    %538 = vmatprep.subr.bf16.mxu0 0
    %539 = vmatpush1.bf16.msra.mxu0 0
    %540 = vmatprep.subr.bf16.mxu0 0
    %541 = vmatpush1.bf16.msra.mxu0 0
    %542 = vmatprep.subr.bf16.mxu0 0
    %543 = vmatpush1.bf16.msra.mxu0 0
    %544 = vmatprep.subr.bf16.mxu0 0
    %545 = vmatpush1.bf16.msra.mxu0 0
    %546 = vmatprep.subr.bf16.mxu0 0
    %547 = vmatpush1.bf16.msra.mxu0 0
    %548 = vmatprep.subr.bf16.mxu0 0
    %549 = vmatpush1.bf16.msra.mxu0 0
    %550 = vmatprep.subr.bf16.mxu0 0
    %551 = vmatpush1.bf16.msra.mxu0 0
    %552 = vmatprep.subr.bf16.mxu0 0
    %553 = vmatpush1.bf16.msra.mxu0 0
    %554 = vmatprep.subr.bf16.mxu0 0
    %555 = vmatpush1.bf16.msra.mxu0 0
    %556 = vmatprep.subr.bf16.mxu0 0
    %557 = vmatpush1.bf16.msra.mxu0 0
    %558 = vmatprep.subr.bf16.mxu0 0
    %559 = vmatpush1.bf16.msra.mxu0 0
    %560 = vmatprep.subr.bf16.mxu0 0
    %561 = vmatpush1.bf16.msra.mxu0 0
    %562 = vmatprep.subr.bf16.mxu0 0
    %563 = vmatpush1.bf16.msra.mxu0 0
    %564 = vmatprep.mubr.bf16.mxu0 0
    %565 = vmatmul.mubr.bf16.gmra.mrb[0].mxu0 %v527
    %v566 = vpop.f32.mrb[0].mxu0
    %v567 = vadd.f32 0.0, %v566
    %v568 = vpop.f32.mrb[0].mxu0
    %v569 = vpop.f32.mrb[0].mxu0
    %v570 = vadd.f32 0.0, %v569
    %v571 = vpop.f32.mrb[0].mxu0
    %572 = vmatprep.mubr.bf16.mxu0 0
    %573 = vmatmul.mubr.bf16.gmra.mrb[0].mxu0 %v530
    %v574 = vpop.f32.mrb[0].mxu0
    %v575 = vadd.f32 0.0, %v574
    %v576 = vpop.f32.mrb[0].mxu0
    %v577 = vpop.f32.mrb[0].mxu0
    %v578 = vadd.f32 0.0, %v577
    %v579 = vpop.f32.mrb[0].mxu0
    %580 = vdwg.mxu0
    %v581 = vadd.f32 %v262, %v567
    %v582 = vadd.f32 %v263, %v570
    %v583 = vadd.f32 %v264, %v575
    %v584 = vadd.f32 %v265, %v578
    %v585 = vxor.u32 %v581, 2147483648
    %v586 = vxor.u32 %v582, 2147483648
    %v587 = vxor.u32 %v583, 2147483648
    %v588 = vxor.u32 %v584, 2147483648
    %v589 = vmul.f32 %v585, 1.442695
    %v590 = vpow.pop %v589
    %v591 = vmul.f32 %v586, 1.442695
    %v592 = vpow.pop %v591
    %v593 = vmul.f32 %v587, 1.442695
    %v594 = vpow.pop %v593
    %v595 = vmul.f32 %v588, 1.442695
    %v596 = vpow.pop %v595
    %v597 = vadd.f32 %v590, 1.0
    %v598 = vadd.f32 %v592, 1.0
    %v599 = vadd.f32 %v594, 1.0
    %v600 = vadd.f32 %v596, 1.0
    %v601 = vrcp.pop %v597
    %v602 = vmul.f32 1.0, %v601
    %v603 = vrcp.pop %v598
    %v604 = vmul.f32 1.0, %v603
    %v605 = vrcp.pop %v599
    %v606 = vmul.f32 1.0, %v605
    %v607 = vrcp.pop %v600
    %v608 = vmul.f32 1.0, %v607
    %v609 = vmul.f32 %v602, 2.0
    %v610 = vmul.f32 %v604, 2.0
    %v611 = vmul.f32 %v606, 2.0
    %v612 = vmul.f32 %v608, 2.0
    %v613 = vsub.f32 %v609, 1.0
    %v614 = vsub.f32 %v610, 1.0
    %v615 = vsub.f32 %v611, 1.0
    %v616 = vsub.f32 %v612, 1.0
    %621 = vrot.lane.b32.xlu0 %v602, 96
    %v622 = vpop.permute.xlu0 %621
    %623 = vrot.lane.b32.xlu0 %v604, 96
    %v624 = vpop.permute.xlu0 %623
    %625 = vrot.lane.b32.xlu0 %v606, 96
    %v626 = vpop.permute.xlu0 %625
    %627 = vrot.lane.b32.xlu0 %v608, 96
    %v628 = vpop.permute.xlu0 %627
    %v633 = vmul.f32 %v613, %v622
    %v634 = vmul.f32 %v614, %v624
    %v635 = vmul.f32 %v615, %v626
    %v636 = vmul.f32 %v616, %v628
    %637 = vrot.lane.b32.xlu0 %v602, 64
    %v638 = vpop.permute.xlu0 %637
    %639 = vrot.lane.b32.xlu0 %v604, 64
    %v640 = vpop.permute.xlu0 %639
    %641 = vrot.lane.b32.xlu0 %v606, 64
    %v642 = vpop.permute.xlu0 %641
    %643 = vrot.lane.b32.xlu0 %v608, 64
    %v644 = vpop.permute.xlu0 %643
    %v649 = vmul.f32 %v500, %v638
    %v650 = vmul.f32 %v501, %v640
    %v651 = vmul.f32 %v502, %v642
    %v652 = vmul.f32 %v503, %v644
    %v653 = vadd.f32 %v633, %v649
    %v654 = vadd.f32 %v634, %v650
    %v655 = vadd.f32 %v635, %v651
    %v656 = vadd.f32 %v636, %v652
    %v657 = vtanh.pop %v653
    %v658 = vtanh.pop %v654
    %v659 = vtanh.pop %v655
    %v660 = vtanh.pop %v656
    %661 = vrot.lane.b32.xlu0 %v602, 32
    %v662 = vpop.permute.xlu0 %661
    %663 = vrot.lane.b32.xlu0 %v604, 32
    %v664 = vpop.permute.xlu0 %663
    %665 = vrot.lane.b32.xlu0 %v606, 32
    %v666 = vpop.permute.xlu0 %665
    %667 = vrot.lane.b32.xlu0 %v608, 32
    %v668 = vpop.permute.xlu0 %667
    %v673 = vmul.f32 %v657, %v662
    %v674 = vmul.f32 %v658, %v664
    %v675 = vmul.f32 %v659, %v666
    %v676 = vmul.f32 %v660, %v668
    %v677 = vpack.c.bf16 %v674, %v673
    %v678 = vpack.c.bf16 %v676, %v675
    %v680 = vsel %vm372, %v677, 0
    %v683 = vsel %vm372, %v678, 0
    %685 = vmatprep.subr.bf16.mxu0 0
    %686 = vmatpush1.bf16.msra.mxu0 %v368
    %687 = vmatprep.subr.bf16.mxu0 0
    %688 = vmatpush1.bf16.msra.mxu0 %v369
    %689 = vmatprep.subr.bf16.mxu0 0
    %690 = vmatpush1.bf16.msra.mxu0 0
    %691 = vmatprep.subr.bf16.mxu0 0
    %692 = vmatpush1.bf16.msra.mxu0 0
    %693 = vmatprep.subr.bf16.mxu0 0
    %694 = vmatpush1.bf16.msra.mxu0 0
    %695 = vmatprep.subr.bf16.mxu0 0
    %696 = vmatpush1.bf16.msra.mxu0 0
    %697 = vmatprep.subr.bf16.mxu0 0
    %698 = vmatpush1.bf16.msra.mxu0 0
    %699 = vmatprep.subr.bf16.mxu0 0
    %700 = vmatpush1.bf16.msra.mxu0 0
    %701 = vmatprep.subr.bf16.mxu0 0
    %702 = vmatpush1.bf16.msra.mxu0 0
    %703 = vmatprep.subr.bf16.mxu0 0
    %704 = vmatpush1.bf16.msra.mxu0 0
    %705 = vmatprep.subr.bf16.mxu0 0
    %706 = vmatpush1.bf16.msra.mxu0 0
    %707 = vmatprep.subr.bf16.mxu0 0
    %708 = vmatpush1.bf16.msra.mxu0 0
    %709 = vmatprep.subr.bf16.mxu0 0
    %710 = vmatpush1.bf16.msra.mxu0 0
    %711 = vmatprep.subr.bf16.mxu0 0
    %712 = vmatpush1.bf16.msra.mxu0 0
    %713 = vmatprep.subr.bf16.mxu0 0
    %714 = vmatpush1.bf16.msra.mxu0 0
    %715 = vmatprep.subr.bf16.mxu0 0
    %716 = vmatpush1.bf16.msra.mxu0 0
    %717 = vmatprep.mubr.bf16.mxu0 0
    %718 = vmatmul.mubr.bf16.gmra.mrb[0].mxu0 %v680
    %v719 = vpop.f32.mrb[0].mxu0
    %v720 = vadd.f32 0.0, %v719
    %v721 = vpop.f32.mrb[0].mxu0
    %v722 = vpop.f32.mrb[0].mxu0
    %v723 = vadd.f32 0.0, %v722
    %v724 = vpop.f32.mrb[0].mxu0
    %725 = vmatprep.mubr.bf16.mxu0 0
    %726 = vmatmul.mubr.bf16.gmra.mrb[0].mxu0 %v683
    %v727 = vpop.f32.mrb[0].mxu0
    %v728 = vadd.f32 0.0, %v727
    %v729 = vpop.f32.mrb[0].mxu0
    %v730 = vpop.f32.mrb[0].mxu0
    %v731 = vadd.f32 0.0, %v730
    %v732 = vpop.f32.mrb[0].mxu0
    %733 = vdwg.mxu0
    %v734 = vadd.f32 %v266, %v720
    %v735 = vadd.f32 %v267, %v723
    %v736 = vadd.f32 %v268, %v728
    %v737 = vadd.f32 %v269, %v731
    %v738 = vxor.u32 %v734, 2147483648
    %v739 = vxor.u32 %v735, 2147483648
    %v740 = vxor.u32 %v736, 2147483648
    %v741 = vxor.u32 %v737, 2147483648
    %v742 = vmul.f32 %v738, 1.442695
    %v743 = vpow.pop %v742
    %v744 = vmul.f32 %v739, 1.442695
    %v745 = vpow.pop %v744
    %v746 = vmul.f32 %v740, 1.442695
    %v747 = vpow.pop %v746
    %v748 = vmul.f32 %v741, 1.442695
    %v749 = vpow.pop %v748
    %v750 = vadd.f32 %v743, 1.0
    %v751 = vadd.f32 %v745, 1.0
    %v752 = vadd.f32 %v747, 1.0
    %v753 = vadd.f32 %v749, 1.0
    %v754 = vrcp.pop %v750
    %v755 = vmul.f32 1.0, %v754
    %v756 = vrcp.pop %v751
    %v757 = vmul.f32 1.0, %v756
    %v758 = vrcp.pop %v752
    %v759 = vmul.f32 1.0, %v758
    %v760 = vrcp.pop %v753
    %v761 = vmul.f32 1.0, %v760
    %v762 = vmul.f32 %v755, 2.0
    %v763 = vmul.f32 %v757, 2.0
    %v764 = vmul.f32 %v759, 2.0
    %v765 = vmul.f32 %v761, 2.0
    %v766 = vsub.f32 %v762, 1.0
    %v767 = vsub.f32 %v763, 1.0
    %v768 = vsub.f32 %v764, 1.0
    %v769 = vsub.f32 %v765, 1.0
    %774 = vrot.lane.b32.xlu0 %v755, 96
    %v775 = vpop.permute.xlu0 %774
    %776 = vrot.lane.b32.xlu0 %v757, 96
    %v777 = vpop.permute.xlu0 %776
    %778 = vrot.lane.b32.xlu0 %v759, 96
    %v779 = vpop.permute.xlu0 %778
    %780 = vrot.lane.b32.xlu0 %v761, 96
    %v781 = vpop.permute.xlu0 %780
    %v786 = vmul.f32 %v766, %v775
    %v787 = vmul.f32 %v767, %v777
    %v788 = vmul.f32 %v768, %v779
    %v789 = vmul.f32 %v769, %v781
    %790 = vrot.lane.b32.xlu0 %v755, 64
    %v791 = vpop.permute.xlu0 %790
    %792 = vrot.lane.b32.xlu0 %v757, 64
    %v793 = vpop.permute.xlu0 %792
    %794 = vrot.lane.b32.xlu0 %v759, 64
    %v795 = vpop.permute.xlu0 %794
    %796 = vrot.lane.b32.xlu0 %v761, 64
    %v797 = vpop.permute.xlu0 %796
    %v802 = vmul.f32 %v653, %v791
    %v803 = vmul.f32 %v654, %v793
    %v804 = vmul.f32 %v655, %v795
    %v805 = vmul.f32 %v656, %v797
    %v806 = vadd.f32 %v786, %v802
    %v807 = vadd.f32 %v787, %v803
    %v808 = vadd.f32 %v788, %v804
    %v809 = vadd.f32 %v789, %v805
    %v810 = vtanh.pop %v806
    %v811 = vtanh.pop %v807
    %v812 = vtanh.pop %v808
    %v813 = vtanh.pop %v809
    %814 = vrot.lane.b32.xlu0 %v755, 32
    %v815 = vpop.permute.xlu0 %814
    %816 = vrot.lane.b32.xlu0 %v757, 32
    %v817 = vpop.permute.xlu0 %816
    %818 = vrot.lane.b32.xlu0 %v759, 32
    %v819 = vpop.permute.xlu0 %818
    %820 = vrot.lane.b32.xlu0 %v761, 32
    %v821 = vpop.permute.xlu0 %820
    %v826 = vmul.f32 %v810, %v815
    %v827 = vmul.f32 %v811, %v817
    %v828 = vmul.f32 %v812, %v819
    %v829 = vmul.f32 %v813, %v821
    %v830 = vpack.c.bf16 %v827, %v826
    %v831 = vpack.c.bf16 %v829, %v828
    %v833 = vsel %vm372, %v830, 0
    %v836 = vsel %vm372, %v831, 0
    %838 = vmatprep.subr.bf16.mxu0 0
    %839 = vmatpush1.bf16.msra.mxu0 %v368
    %840 = vmatprep.subr.bf16.mxu0 0
    %841 = vmatpush1.bf16.msra.mxu0 %v369
    %842 = vmatprep.subr.bf16.mxu0 0
    %843 = vmatpush1.bf16.msra.mxu0 0
    %844 = vmatprep.subr.bf16.mxu0 0
    %845 = vmatpush1.bf16.msra.mxu0 0
    %846 = vmatprep.subr.bf16.mxu0 0
    %847 = vmatpush1.bf16.msra.mxu0 0
    %848 = vmatprep.subr.bf16.mxu0 0
    %849 = vmatpush1.bf16.msra.mxu0 0
    %850 = vmatprep.subr.bf16.mxu0 0
    %851 = vmatpush1.bf16.msra.mxu0 0
    %852 = vmatprep.subr.bf16.mxu0 0
    %853 = vmatpush1.bf16.msra.mxu0 0
    %854 = vmatprep.subr.bf16.mxu0 0
    %855 = vmatpush1.bf16.msra.mxu0 0
    %856 = vmatprep.subr.bf16.mxu0 0
    %857 = vmatpush1.bf16.msra.mxu0 0
    %858 = vmatprep.subr.bf16.mxu0 0
    %859 = vmatpush1.bf16.msra.mxu0 0
    %860 = vmatprep.subr.bf16.mxu0 0
    %861 = vmatpush1.bf16.msra.mxu0 0
    %862 = vmatprep.subr.bf16.mxu0 0
    %863 = vmatpush1.bf16.msra.mxu0 0
    %864 = vmatprep.subr.bf16.mxu0 0
    %865 = vmatpush1.bf16.msra.mxu0 0
    %866 = vmatprep.subr.bf16.mxu0 0
    %867 = vmatpush1.bf16.msra.mxu0 0
    %868 = vmatprep.subr.bf16.mxu0 0
    %869 = vmatpush1.bf16.msra.mxu0 0
    %870 = vmatprep.mubr.bf16.mxu0 0
    %871 = vmatmul.mubr.bf16.gmra.mrb[0].mxu0 %v833
    %v872 = vpop.f32.mrb[0].mxu0
    %v873 = vadd.f32 0.0, %v872
    %v874 = vpop.f32.mrb[0].mxu0
    %v875 = vpop.f32.mrb[0].mxu0
    %v876 = vadd.f32 0.0, %v875
    %v877 = vpop.f32.mrb[0].mxu0
    %878 = vmatprep.mubr.bf16.mxu0 0
    %879 = vmatmul.mubr.bf16.gmra.mrb[0].mxu0 %v836
    %v880 = vpop.f32.mrb[0].mxu0
    %v881 = vadd.f32 0.0, %v880
    %v882 = vpop.f32.mrb[0].mxu0
    %v883 = vpop.f32.mrb[0].mxu0
    %v884 = vadd.f32 0.0, %v883
    %v885 = vpop.f32.mrb[0].mxu0
    %886 = vdwg.mxu0
    %v887 = vadd.f32 %v270, %v873
    %v888 = vadd.f32 %v271, %v876
    %v889 = vadd.f32 %v272, %v881
    %v890 = vadd.f32 %v273, %v884
    %v891 = vxor.u32 %v887, 2147483648
    %v892 = vxor.u32 %v888, 2147483648
    %v893 = vxor.u32 %v889, 2147483648
    %v894 = vxor.u32 %v890, 2147483648
    %v895 = vmul.f32 %v891, 1.442695
    %v896 = vpow.pop %v895
    %v897 = vmul.f32 %v892, 1.442695
    %v898 = vpow.pop %v897
    %v899 = vmul.f32 %v893, 1.442695
    %v900 = vpow.pop %v899
    %v901 = vmul.f32 %v894, 1.442695
    %v902 = vpow.pop %v901
    %v903 = vadd.f32 %v896, 1.0
    %v904 = vadd.f32 %v898, 1.0
    %v905 = vadd.f32 %v900, 1.0
    %v906 = vadd.f32 %v902, 1.0
    %v907 = vrcp.pop %v903
    %v908 = vmul.f32 1.0, %v907
    %v909 = vrcp.pop %v904
    %v910 = vmul.f32 1.0, %v909
    %v911 = vrcp.pop %v905
    %v912 = vmul.f32 1.0, %v911
    %v913 = vrcp.pop %v906
    %v914 = vmul.f32 1.0, %v913
    %v915 = vmul.f32 %v908, 2.0
    %v916 = vmul.f32 %v910, 2.0
    %v917 = vmul.f32 %v912, 2.0
    %v918 = vmul.f32 %v914, 2.0
    %v919 = vsub.f32 %v915, 1.0
    %v920 = vsub.f32 %v916, 1.0
    %v921 = vsub.f32 %v917, 1.0
    %v922 = vsub.f32 %v918, 1.0
    %927 = vrot.lane.b32.xlu0 %v908, 96
    %v928 = vpop.permute.xlu0 %927
    %929 = vrot.lane.b32.xlu0 %v910, 96
    %v930 = vpop.permute.xlu0 %929
    %931 = vrot.lane.b32.xlu0 %v912, 96
    %v932 = vpop.permute.xlu0 %931
    %933 = vrot.lane.b32.xlu0 %v914, 96
    %v934 = vpop.permute.xlu0 %933
    %v939 = vmul.f32 %v919, %v928
    %v940 = vmul.f32 %v920, %v930
    %v941 = vmul.f32 %v921, %v932
    %v942 = vmul.f32 %v922, %v934
    %943 = vrot.lane.b32.xlu0 %v908, 64
    %v944 = vpop.permute.xlu0 %943
    %945 = vrot.lane.b32.xlu0 %v910, 64
    %v946 = vpop.permute.xlu0 %945
    %947 = vrot.lane.b32.xlu0 %v912, 64
    %v948 = vpop.permute.xlu0 %947
    %949 = vrot.lane.b32.xlu0 %v914, 64
    %v950 = vpop.permute.xlu0 %949
    %v955 = vmul.f32 %v806, %v944
    %v956 = vmul.f32 %v807, %v946
    %v957 = vmul.f32 %v808, %v948
    %v958 = vmul.f32 %v809, %v950
    %v959 = vadd.f32 %v939, %v955
    %v960 = vadd.f32 %v940, %v956
    %v961 = vadd.f32 %v941, %v957
    %v962 = vadd.f32 %v942, %v958
    %v963 = vtanh.pop %v959
    %v964 = vtanh.pop %v960
    %v965 = vtanh.pop %v961
    %v966 = vtanh.pop %v962
    %967 = vrot.lane.b32.xlu0 %v908, 32
    %v968 = vpop.permute.xlu0 %967
    %969 = vrot.lane.b32.xlu0 %v910, 32
    %v970 = vpop.permute.xlu0 %969
    %971 = vrot.lane.b32.xlu0 %v912, 32
    %v972 = vpop.permute.xlu0 %971
    %973 = vrot.lane.b32.xlu0 %v914, 32
    %v974 = vpop.permute.xlu0 %973
    %v979 = vmul.f32 %v963, %v968
    %v980 = vmul.f32 %v964, %v970
    %v981 = vmul.f32 %v965, %v972
    %v982 = vmul.f32 %v966, %v974
    %v983 = vpack.c.bf16 %v980, %v979
    %v984 = vpack.c.bf16 %v982, %v981
    %v986 = vsel %vm372, %v983, 0
    %v989 = vsel %vm372, %v984, 0
    %991 = vmatprep.subr.bf16.mxu0 0
    %992 = vmatpush1.bf16.msra.mxu0 %v368
    %993 = vmatprep.subr.bf16.mxu0 0
    %994 = vmatpush1.bf16.msra.mxu0 %v369
    %995 = vmatprep.subr.bf16.mxu0 0
    %996 = vmatpush1.bf16.msra.mxu0 0
    %997 = vmatprep.subr.bf16.mxu0 0
    %998 = vmatpush1.bf16.msra.mxu0 0
    %999 = vmatprep.subr.bf16.mxu0 0
    %1000 = vmatpush1.bf16.msra.mxu0 0
    %1001 = vmatprep.subr.bf16.mxu0 0
    %1002 = vmatpush1.bf16.msra.mxu0 0
    %1003 = vmatprep.subr.bf16.mxu0 0
    %1004 = vmatpush1.bf16.msra.mxu0 0
    %1005 = vmatprep.subr.bf16.mxu0 0
    %1006 = vmatpush1.bf16.msra.mxu0 0
    %1007 = vmatprep.subr.bf16.mxu0 0
    %1008 = vmatpush1.bf16.msra.mxu0 0
    %1009 = vmatprep.subr.bf16.mxu0 0
    %1010 = vmatpush1.bf16.msra.mxu0 0
    %1011 = vmatprep.subr.bf16.mxu0 0
    %1012 = vmatpush1.bf16.msra.mxu0 0
    %1013 = vmatprep.subr.bf16.mxu0 0
    %1014 = vmatpush1.bf16.msra.mxu0 0
    %1015 = vmatprep.subr.bf16.mxu0 0
    %1016 = vmatpush1.bf16.msra.mxu0 0
    %1017 = vmatprep.subr.bf16.mxu0 0
    %1018 = vmatpush1.bf16.msra.mxu0 0
    %1019 = vmatprep.subr.bf16.mxu0 0
    %1020 = vmatpush1.bf16.msra.mxu0 0
    %1021 = vmatprep.subr.bf16.mxu0 0
    %1022 = vmatpush1.bf16.msra.mxu0 0
    %1023 = vmatprep.mubr.bf16.mxu0 0
    %1024 = vmatmul.mubr.bf16.gmra.mrb[0].mxu0 %v986
    %v1025 = vpop.f32.mrb[0].mxu0
    %v1026 = vadd.f32 0.0, %v1025
    %v1027 = vpop.f32.mrb[0].mxu0
    %v1028 = vpop.f32.mrb[0].mxu0
    %v1029 = vadd.f32 0.0, %v1028
    %v1030 = vpop.f32.mrb[0].mxu0
    %1031 = vmatprep.mubr.bf16.mxu0 0
    %1032 = vmatmul.mubr.bf16.gmra.mrb[0].mxu0 %v989
    %v1033 = vpop.f32.mrb[0].mxu0
    %v1034 = vadd.f32 0.0, %v1033
    %v1035 = vpop.f32.mrb[0].mxu0
    %v1036 = vpop.f32.mrb[0].mxu0
    %v1037 = vadd.f32 0.0, %v1036
    %v1038 = vpop.f32.mrb[0].mxu0
    %1039 = vdwg.mxu0
    %v1040 = vadd.f32 %v274, %v1026
    %v1041 = vadd.f32 %v275, %v1029
    %v1042 = vadd.f32 %v276, %v1034
    %v1043 = vadd.f32 %v277, %v1037
    %v1044 = vxor.u32 %v1040, 2147483648
    %v1045 = vxor.u32 %v1041, 2147483648
    %v1046 = vxor.u32 %v1042, 2147483648
    %v1047 = vxor.u32 %v1043, 2147483648
    %v1048 = vmul.f32 %v1044, 1.442695
    %v1049 = vpow.pop %v1048
    %v1050 = vmul.f32 %v1045, 1.442695
    %v1051 = vpow.pop %v1050
    %v1052 = vmul.f32 %v1046, 1.442695
    %v1053 = vpow.pop %v1052
    %v1054 = vmul.f32 %v1047, 1.442695
    %v1055 = vpow.pop %v1054
    %v1056 = vadd.f32 %v1049, 1.0
    %v1057 = vadd.f32 %v1051, 1.0
    %v1058 = vadd.f32 %v1053, 1.0
    %v1059 = vadd.f32 %v1055, 1.0
    %v1060 = vrcp.pop %v1056
    %v1061 = vmul.f32 1.0, %v1060
    %v1062 = vrcp.pop %v1057
    %v1063 = vmul.f32 1.0, %v1062
    %v1064 = vrcp.pop %v1058
    %v1065 = vmul.f32 1.0, %v1064
    %v1066 = vrcp.pop %v1059
    %v1067 = vmul.f32 1.0, %v1066
    %v1068 = vmul.f32 %v1061, 2.0
    %v1069 = vmul.f32 %v1063, 2.0
    %v1070 = vmul.f32 %v1065, 2.0
    %v1071 = vmul.f32 %v1067, 2.0
    %v1072 = vsub.f32 %v1068, 1.0
    %v1073 = vsub.f32 %v1069, 1.0
    %v1074 = vsub.f32 %v1070, 1.0
    %v1075 = vsub.f32 %v1071, 1.0
    %1080 = vrot.lane.b32.xlu0 %v1061, 96
    %v1081 = vpop.permute.xlu0 %1080
    %1082 = vrot.lane.b32.xlu0 %v1063, 96
    %v1083 = vpop.permute.xlu0 %1082
    %1084 = vrot.lane.b32.xlu0 %v1065, 96
    %v1085 = vpop.permute.xlu0 %1084
    %1086 = vrot.lane.b32.xlu0 %v1067, 96
    %v1087 = vpop.permute.xlu0 %1086
    %v1092 = vmul.f32 %v1072, %v1081
    %v1093 = vmul.f32 %v1073, %v1083
    %v1094 = vmul.f32 %v1074, %v1085
    %v1095 = vmul.f32 %v1075, %v1087
    %1096 = vrot.lane.b32.xlu0 %v1061, 64
    %v1097 = vpop.permute.xlu0 %1096
    %1098 = vrot.lane.b32.xlu0 %v1063, 64
    %v1099 = vpop.permute.xlu0 %1098
    %1100 = vrot.lane.b32.xlu0 %v1065, 64
    %v1101 = vpop.permute.xlu0 %1100
    %1102 = vrot.lane.b32.xlu0 %v1067, 64
    %v1103 = vpop.permute.xlu0 %1102
    %v1108 = vmul.f32 %v959, %v1097
    %v1109 = vmul.f32 %v960, %v1099
    %v1110 = vmul.f32 %v961, %v1101
    %v1111 = vmul.f32 %v962, %v1103
    %v1112 = vadd.f32 %v1092, %v1108
    %v1113 = vadd.f32 %v1093, %v1109
    %v1114 = vadd.f32 %v1094, %v1110
    %v1115 = vadd.f32 %v1095, %v1111
    %v1116 = vtanh.pop %v1112
    %v1117 = vtanh.pop %v1113
    %v1118 = vtanh.pop %v1114
    %v1119 = vtanh.pop %v1115
    %1120 = vrot.lane.b32.xlu0 %v1061, 32
    %v1121 = vpop.permute.xlu0 %1120
    %1122 = vrot.lane.b32.xlu0 %v1063, 32
    %v1123 = vpop.permute.xlu0 %1122
    %1124 = vrot.lane.b32.xlu0 %v1065, 32
    %v1125 = vpop.permute.xlu0 %1124
    %1126 = vrot.lane.b32.xlu0 %v1067, 32
    %v1127 = vpop.permute.xlu0 %1126
    %v1132 = vmul.f32 %v1116, %v1121
    %v1133 = vmul.f32 %v1117, %v1123
    %v1134 = vmul.f32 %v1118, %v1125
    %v1135 = vmul.f32 %v1119, %v1127
    %v1136 = vpack.c.bf16 %v1133, %v1132
    %v1137 = vpack.c.bf16 %v1135, %v1134
    %v1139 = vsel %vm372, %v1136, 0
    %v1142 = vsel %vm372, %v1137, 0
    %1144 = vmatprep.subr.bf16.mxu0 0
    %1145 = vmatpush1.bf16.msra.mxu0 %v368
    %1146 = vmatprep.subr.bf16.mxu0 0
    %1147 = vmatpush1.bf16.msra.mxu0 %v369
    %1148 = vmatprep.subr.bf16.mxu0 0
    %1149 = vmatpush1.bf16.msra.mxu0 0
    %1150 = vmatprep.subr.bf16.mxu0 0
    %1151 = vmatpush1.bf16.msra.mxu0 0
    %1152 = vmatprep.subr.bf16.mxu0 0
    %1153 = vmatpush1.bf16.msra.mxu0 0
    %1154 = vmatprep.subr.bf16.mxu0 0
    %1155 = vmatpush1.bf16.msra.mxu0 0
    %1156 = vmatprep.subr.bf16.mxu0 0
    %1157 = vmatpush1.bf16.msra.mxu0 0
    %1158 = vmatprep.subr.bf16.mxu0 0
    %1159 = vmatpush1.bf16.msra.mxu0 0
    %1160 = vmatprep.subr.bf16.mxu0 0
    %1161 = vmatpush1.bf16.msra.mxu0 0
    %1162 = vmatprep.subr.bf16.mxu0 0
    %1163 = vmatpush1.bf16.msra.mxu0 0
    %1164 = vmatprep.subr.bf16.mxu0 0
    %1165 = vmatpush1.bf16.msra.mxu0 0
    %1166 = vmatprep.subr.bf16.mxu0 0
    %1167 = vmatpush1.bf16.msra.mxu0 0
    %1168 = vmatprep.subr.bf16.mxu0 0
    %1169 = vmatpush1.bf16.msra.mxu0 0
    %1170 = vmatprep.subr.bf16.mxu0 0
    %1171 = vmatpush1.bf16.msra.mxu0 0
    %1172 = vmatprep.subr.bf16.mxu0 0
    %1173 = vmatpush1.bf16.msra.mxu0 0
    %1174 = vmatprep.subr.bf16.mxu0 0
    %1175 = vmatpush1.bf16.msra.mxu0 0
    %1176 = vmatprep.mubr.bf16.mxu0 0
    %1177 = vmatmul.mubr.bf16.gmra.mrb[0].mxu0 %v1139
    %v1178 = vpop.f32.mrb[0].mxu0
    %v1179 = vadd.f32 0.0, %v1178
    %v1180 = vpop.f32.mrb[0].mxu0
    %v1181 = vpop.f32.mrb[0].mxu0
    %v1182 = vadd.f32 0.0, %v1181
    %v1183 = vpop.f32.mrb[0].mxu0
    %1184 = vmatprep.mubr.bf16.mxu0 0
    %1185 = vmatmul.mubr.bf16.gmra.mrb[0].mxu0 %v1142
    %v1186 = vpop.f32.mrb[0].mxu0
    %v1187 = vadd.f32 0.0, %v1186
    %v1188 = vpop.f32.mrb[0].mxu0
    %v1189 = vpop.f32.mrb[0].mxu0
    %v1190 = vadd.f32 0.0, %v1189
    %v1191 = vpop.f32.mrb[0].mxu0
    %1192 = vdwg.mxu0
    %v1193 = vadd.f32 %v278, %v1179
    %v1194 = vadd.f32 %v279, %v1182
    %v1195 = vadd.f32 %v280, %v1187
    %v1196 = vadd.f32 %v281, %v1190
    %v1197 = vxor.u32 %v1193, 2147483648
    %v1198 = vxor.u32 %v1194, 2147483648
    %v1199 = vxor.u32 %v1195, 2147483648
    %v1200 = vxor.u32 %v1196, 2147483648
    %v1201 = vmul.f32 %v1197, 1.442695
    %v1202 = vpow.pop %v1201
    %v1203 = vmul.f32 %v1198, 1.442695
    %v1204 = vpow.pop %v1203
    %v1205 = vmul.f32 %v1199, 1.442695
    %v1206 = vpow.pop %v1205
    %v1207 = vmul.f32 %v1200, 1.442695
    %v1208 = vpow.pop %v1207
    %v1209 = vadd.f32 %v1202, 1.0
    %v1210 = vadd.f32 %v1204, 1.0
    %v1211 = vadd.f32 %v1206, 1.0
    %v1212 = vadd.f32 %v1208, 1.0
    %v1213 = vrcp.pop %v1209
    %v1214 = vmul.f32 1.0, %v1213
    %v1215 = vrcp.pop %v1210
    %v1216 = vmul.f32 1.0, %v1215
    %v1217 = vrcp.pop %v1211
    %v1218 = vmul.f32 1.0, %v1217
    %v1219 = vrcp.pop %v1212
    %v1220 = vmul.f32 1.0, %v1219
    %v1221 = vmul.f32 %v1214, 2.0
    %v1222 = vmul.f32 %v1216, 2.0
    %v1223 = vmul.f32 %v1218, 2.0
    %v1224 = vmul.f32 %v1220, 2.0
    %v1225 = vsub.f32 %v1221, 1.0
    %v1226 = vsub.f32 %v1222, 1.0
    %v1227 = vsub.f32 %v1223, 1.0
    %v1228 = vsub.f32 %v1224, 1.0
    %1233 = vrot.lane.b32.xlu0 %v1214, 96
    %v1234 = vpop.permute.xlu0 %1233
    %1235 = vrot.lane.b32.xlu0 %v1216, 96
    %v1236 = vpop.permute.xlu0 %1235
    %1237 = vrot.lane.b32.xlu0 %v1218, 96
    %v1238 = vpop.permute.xlu0 %1237
    %1239 = vrot.lane.b32.xlu0 %v1220, 96
    %v1240 = vpop.permute.xlu0 %1239
    %v1245 = vmul.f32 %v1225, %v1234
    %v1246 = vmul.f32 %v1226, %v1236
    %v1247 = vmul.f32 %v1227, %v1238
    %v1248 = vmul.f32 %v1228, %v1240
    %1249 = vrot.lane.b32.xlu0 %v1214, 64
    %v1250 = vpop.permute.xlu0 %1249
    %1251 = vrot.lane.b32.xlu0 %v1216, 64
    %v1252 = vpop.permute.xlu0 %1251
    %1253 = vrot.lane.b32.xlu0 %v1218, 64
    %v1254 = vpop.permute.xlu0 %1253
    %1255 = vrot.lane.b32.xlu0 %v1220, 64
    %v1256 = vpop.permute.xlu0 %1255
    %v1261 = vmul.f32 %v1112, %v1250
    %v1262 = vmul.f32 %v1113, %v1252
    %v1263 = vmul.f32 %v1114, %v1254
    %v1264 = vmul.f32 %v1115, %v1256
    %v1265 = vadd.f32 %v1245, %v1261
    %v1266 = vadd.f32 %v1246, %v1262
    %v1267 = vadd.f32 %v1247, %v1263
    %v1268 = vadd.f32 %v1248, %v1264
    %v1269 = vtanh.pop %v1265
    %v1270 = vtanh.pop %v1266
    %v1271 = vtanh.pop %v1267
    %v1272 = vtanh.pop %v1268
    %1273 = vrot.lane.b32.xlu0 %v1214, 32
    %v1274 = vpop.permute.xlu0 %1273
    %1275 = vrot.lane.b32.xlu0 %v1216, 32
    %v1276 = vpop.permute.xlu0 %1275
    %1277 = vrot.lane.b32.xlu0 %v1218, 32
    %v1278 = vpop.permute.xlu0 %1277
    %1279 = vrot.lane.b32.xlu0 %v1220, 32
    %v1280 = vpop.permute.xlu0 %1279
    %v1285 = vmul.f32 %v1269, %v1274
    %v1286 = vmul.f32 %v1270, %v1276
    %v1287 = vmul.f32 %v1271, %v1278
    %v1288 = vmul.f32 %v1272, %v1280
    %v1289 = vpack.c.bf16 %v1286, %v1285
    %v1290 = vpack.c.bf16 %v1288, %v1287
    %v1292 = vsel %vm372, %v1289, 0
    %v1295 = vsel %vm372, %v1290, 0
    %1297 = vmatprep.subr.bf16.mxu0 0
    %1298 = vmatpush1.bf16.msra.mxu0 %v368
    %1299 = vmatprep.subr.bf16.mxu0 0
    %1300 = vmatpush1.bf16.msra.mxu0 %v369
    %1301 = vmatprep.subr.bf16.mxu0 0
    %1302 = vmatpush1.bf16.msra.mxu0 0
    %1303 = vmatprep.subr.bf16.mxu0 0
    %1304 = vmatpush1.bf16.msra.mxu0 0
    %1305 = vmatprep.subr.bf16.mxu0 0
    %1306 = vmatpush1.bf16.msra.mxu0 0
    %1307 = vmatprep.subr.bf16.mxu0 0
    %1308 = vmatpush1.bf16.msra.mxu0 0
    %1309 = vmatprep.subr.bf16.mxu0 0
    %1310 = vmatpush1.bf16.msra.mxu0 0
    %1311 = vmatprep.subr.bf16.mxu0 0
    %1312 = vmatpush1.bf16.msra.mxu0 0
    %1313 = vmatprep.subr.bf16.mxu0 0
    %1314 = vmatpush1.bf16.msra.mxu0 0
    %1315 = vmatprep.subr.bf16.mxu0 0
    %1316 = vmatpush1.bf16.msra.mxu0 0
    %1317 = vmatprep.subr.bf16.mxu0 0
    %1318 = vmatpush1.bf16.msra.mxu0 0
    %1319 = vmatprep.subr.bf16.mxu0 0
    %1320 = vmatpush1.bf16.msra.mxu0 0
    %1321 = vmatprep.subr.bf16.mxu0 0
    %1322 = vmatpush1.bf16.msra.mxu0 0
    %1323 = vmatprep.subr.bf16.mxu0 0
    %1324 = vmatpush1.bf16.msra.mxu0 0
    %1325 = vmatprep.subr.bf16.mxu0 0
    %1326 = vmatpush1.bf16.msra.mxu0 0
    %1327 = vmatprep.subr.bf16.mxu0 0
    %1328 = vmatpush1.bf16.msra.mxu0 0
    %1329 = vmatprep.mubr.bf16.mxu0 0
    %1330 = vmatmul.mubr.bf16.gmra.mrb[0].mxu0 %v1292
    %v1331 = vpop.f32.mrb[0].mxu0
    %v1332 = vadd.f32 0.0, %v1331
    %v1333 = vpop.f32.mrb[0].mxu0
    %v1334 = vpop.f32.mrb[0].mxu0
    %v1335 = vadd.f32 0.0, %v1334
    %v1336 = vpop.f32.mrb[0].mxu0
    %1337 = vmatprep.mubr.bf16.mxu0 0
    %1338 = vmatmul.mubr.bf16.gmra.mrb[0].mxu0 %v1295
    %v1339 = vpop.f32.mrb[0].mxu0
    %v1340 = vadd.f32 0.0, %v1339
    %v1341 = vpop.f32.mrb[0].mxu0
    %v1342 = vpop.f32.mrb[0].mxu0
    %v1343 = vadd.f32 0.0, %v1342
    %v1344 = vpop.f32.mrb[0].mxu0
    %1345 = vdwg.mxu0
    %v1346 = vadd.f32 %v282, %v1332
    %v1347 = vadd.f32 %v283, %v1335
    %v1348 = vadd.f32 %v284, %v1340
    %v1349 = vadd.f32 %v285, %v1343
    %v1350 = vxor.u32 %v1346, 2147483648
    %v1351 = vxor.u32 %v1347, 2147483648
    %v1352 = vxor.u32 %v1348, 2147483648
    %v1353 = vxor.u32 %v1349, 2147483648
    %v1354 = vmul.f32 %v1350, 1.442695
    %v1355 = vpow.pop %v1354
    %v1356 = vmul.f32 %v1351, 1.442695
    %v1357 = vpow.pop %v1356
    %v1358 = vmul.f32 %v1352, 1.442695
    %v1359 = vpow.pop %v1358
    %v1360 = vmul.f32 %v1353, 1.442695
    %v1361 = vpow.pop %v1360
    %v1362 = vadd.f32 %v1355, 1.0
    %v1363 = vadd.f32 %v1357, 1.0
    %v1364 = vadd.f32 %v1359, 1.0
    %v1365 = vadd.f32 %v1361, 1.0
    %v1366 = vrcp.pop %v1362
    %v1367 = vmul.f32 1.0, %v1366
    %v1368 = vrcp.pop %v1363
    %v1369 = vmul.f32 1.0, %v1368
    %v1370 = vrcp.pop %v1364
    %v1371 = vmul.f32 1.0, %v1370
    %v1372 = vrcp.pop %v1365
    %v1373 = vmul.f32 1.0, %v1372
    %v1374 = vmul.f32 %v1367, 2.0
    %v1375 = vmul.f32 %v1369, 2.0
    %v1376 = vmul.f32 %v1371, 2.0
    %v1377 = vmul.f32 %v1373, 2.0
    %v1378 = vsub.f32 %v1374, 1.0
    %v1379 = vsub.f32 %v1375, 1.0
    %v1380 = vsub.f32 %v1376, 1.0
    %v1381 = vsub.f32 %v1377, 1.0
    %1386 = vrot.lane.b32.xlu0 %v1367, 96
    %v1387 = vpop.permute.xlu0 %1386
    %1388 = vrot.lane.b32.xlu0 %v1369, 96
    %v1389 = vpop.permute.xlu0 %1388
    %1390 = vrot.lane.b32.xlu0 %v1371, 96
    %v1391 = vpop.permute.xlu0 %1390
    %1392 = vrot.lane.b32.xlu0 %v1373, 96
    %v1393 = vpop.permute.xlu0 %1392
    %v1398 = vmul.f32 %v1378, %v1387
    %v1399 = vmul.f32 %v1379, %v1389
    %v1400 = vmul.f32 %v1380, %v1391
    %v1401 = vmul.f32 %v1381, %v1393
    %1402 = vrot.lane.b32.xlu0 %v1367, 64
    %v1403 = vpop.permute.xlu0 %1402
    %1404 = vrot.lane.b32.xlu0 %v1369, 64
    %v1405 = vpop.permute.xlu0 %1404
    %1406 = vrot.lane.b32.xlu0 %v1371, 64
    %v1407 = vpop.permute.xlu0 %1406
    %1408 = vrot.lane.b32.xlu0 %v1373, 64
    %v1409 = vpop.permute.xlu0 %1408
    %v1414 = vmul.f32 %v1265, %v1403
    %v1415 = vmul.f32 %v1266, %v1405
    %v1416 = vmul.f32 %v1267, %v1407
    %v1417 = vmul.f32 %v1268, %v1409
    %v1418 = vadd.f32 %v1398, %v1414
    %v1419 = vadd.f32 %v1399, %v1415
    %v1420 = vadd.f32 %v1400, %v1416
    %v1421 = vadd.f32 %v1401, %v1417
    %v1422 = vtanh.pop %v1418
    %v1423 = vtanh.pop %v1419
    %v1424 = vtanh.pop %v1420
    %v1425 = vtanh.pop %v1421
    %1426 = vrot.lane.b32.xlu0 %v1367, 32
    %v1427 = vpop.permute.xlu0 %1426
    %1428 = vrot.lane.b32.xlu0 %v1369, 32
    %v1429 = vpop.permute.xlu0 %1428
    %1430 = vrot.lane.b32.xlu0 %v1371, 32
    %v1431 = vpop.permute.xlu0 %1430
    %1432 = vrot.lane.b32.xlu0 %v1373, 32
    %v1433 = vpop.permute.xlu0 %1432
    %v1438 = vmul.f32 %v1422, %v1427
    %v1439 = vmul.f32 %v1423, %v1429
    %v1440 = vmul.f32 %v1424, %v1431
    %v1441 = vmul.f32 %v1425, %v1433
    %v1442 = vpack.c.bf16 %v1439, %v1438
    %v1443 = vpack.c.bf16 %v1441, %v1440
    %v1444 = vlaneseq
    %v1445 = vshrl.u32 %v1444, 7
    %v1446 = vsub.s32 2, %v1445
    %v1447 = vrot.slane %v52, %v1446
    %v1452 = vunpack.c.l.b16 %v57
    %v1453 = vunpack.c.l.b16 %v58
    %v1454 = vunpack.c.l.b16 %v59
    %v1455 = vunpack.c.l.b16 %v60
    %v1456 = vpack.c.b16 %v1453, %v1452
    %v1457 = vpack.c.b16 %v1455, %v1454
    %v1461 = vsel %vm372, %v1442, 0
    %v1464 = vsel %vm372, %v1443, 0
    %1466 = vmatprep.subr.bf16.mxu0 0
    %1467 = vmatpush1.bf16.msra.mxu0 %v1456
    %1468 = vmatprep.subr.bf16.mxu0 0
    %1469 = vmatpush1.bf16.msra.mxu0 %v1457
    %1470 = vmatprep.subr.bf16.mxu0 0
    %1471 = vmatpush1.bf16.msra.mxu0 0
    %1472 = vmatprep.subr.bf16.mxu0 0
    %1473 = vmatpush1.bf16.msra.mxu0 0
    %1474 = vmatprep.subr.bf16.mxu0 0
    %1475 = vmatpush1.bf16.msra.mxu0 0
    %1476 = vmatprep.subr.bf16.mxu0 0
    %1477 = vmatpush1.bf16.msra.mxu0 0
    %1478 = vmatprep.subr.bf16.mxu0 0
    %1479 = vmatpush1.bf16.msra.mxu0 0
    %1480 = vmatprep.subr.bf16.mxu0 0
    %1481 = vmatpush1.bf16.msra.mxu0 0
    %1482 = vmatprep.subr.bf16.mxu0 0
    %1483 = vmatpush1.bf16.msra.mxu0 0
    %1484 = vmatprep.subr.bf16.mxu0 0
    %1485 = vmatpush1.bf16.msra.mxu0 0
    %1486 = vmatprep.subr.bf16.mxu0 0
    %1487 = vmatpush1.bf16.msra.mxu0 0
    %1488 = vmatprep.subr.bf16.mxu0 0
    %1489 = vmatpush1.bf16.msra.mxu0 0
    %1490 = vmatprep.subr.bf16.mxu0 0
    %1491 = vmatpush1.bf16.msra.mxu0 0
    %1492 = vmatprep.subr.bf16.mxu0 0
    %1493 = vmatpush1.bf16.msra.mxu0 0
    %1494 = vmatprep.subr.bf16.mxu0 0
    %1495 = vmatpush1.bf16.msra.mxu0 0
    %1496 = vmatprep.subr.bf16.mxu0 0
    %1497 = vmatpush1.bf16.msra.mxu0 0
    %1498 = vmatprep.mubr.bf16.mxu0 0
    %1499 = vmatmul.mubr.bf16.gmra.mrb[0].mxu0 %v1461
    %v1500 = vpop.f32.mrb[0].mxu0
    %v1501 = vadd.f32 %v1447, %v1500
    %v1502 = vpop.f32.mrb[0].mxu0
    %v1503 = vpop.f32.mrb[0].mxu0
    %v1504 = vadd.f32 %v1447, %v1503
    %v1505 = vpop.f32.mrb[0].mxu0
    %1506 = vmatprep.mubr.bf16.mxu0 0
    %1507 = vmatmul.mubr.bf16.gmra.mrb[0].mxu0 %v1464
    %v1508 = vpop.f32.mrb[0].mxu0
    %v1509 = vadd.f32 %v1447, %v1508
    %v1510 = vpop.f32.mrb[0].mxu0
    %v1511 = vpop.f32.mrb[0].mxu0
    %v1512 = vadd.f32 %v1447, %v1511
    %v1513 = vpop.f32.mrb[0].mxu0
    %1514 = vdwg.mxu0
    %vm1515 = vcmask 130048
    %1516 = vst.msk [vmem:[%s3] sm:$0xff] %vm1515, %v1501
    %1517 = vst.msk [vmem:[%s3 + $0x8] sm:$0xff] %vm1515, %v1504
    %1518 = vst.msk [vmem:[%s3 + $0x10] sm:$0xff] %vm1515, %v1509
    %1519 = vst.msk [vmem:[%s3 + $0x18] sm:$0xff] %vm1515, %v1512
    // Predicated region
    $region26: #{tpu_custom_call.1} parent=1 // pred_check
      _
    $region27: #{tpu_custom_call.1} parent=1 // pred_check_branch
      %1521 = sbr.rel (0) target = $region29
    $region28: #{tpu_custom_call.1} parent=1 // pred_region
      _
    $region29: #{tpu_custom_call.1} parent=1 // pred_fallthru
      _
    // Predicated region
    $region30: #{tpu_custom_call.1} parent=1 // pred_check
      _
    $region31: #{tpu_custom_call.1} parent=1 // pred_check_branch
      %1523 = sbr.rel (0) target = $region33
    $region32: #{tpu_custom_call.1} parent=1 // pred_region
      _
    $region33: #{tpu_custom_call.1} parent=1 // pred_fallthru
      _
    %1524 = vsyncpa [#allocation3], 1
    %1525 = vsyncpa [#allocation5], 1

</llo_original>
